<compile_context>
chip_gen: v6e
topology: v6e:2x2x1
jax: 0.10.0
libtpu: 0.0.40
codegen_flags: <defaults>
</compile_context>

<pallas_src>
import jax
import jax.numpy as jnp
from jax.experimental import pallas as pl
from jax.experimental.pallas import tpu as pltpu

LAMBDA = 0.5  # TODO(synk): constant compounding coefficient of the unknown tlayers op (assumed 0.5).


# ---------------------------------------------------------------------------
# Host-side constant preparation (run once; the model weights are constant).
# ---------------------------------------------------------------------------
def _avg_pool_matrix(L):
    """P such that (x @ P) == avg_pool1d(x, kernel=2, stride=2) along the last dim (floor behavior)."""
    Lh = L // 2
    rows = jnp.arange(L)[:, None]
    cols = jnp.arange(Lh)[None, :]
    return jnp.where((rows == 2 * cols) | (rows == 2 * cols + 1), 0.5, 0.0).astype(jnp.float32)


def _pack_rows(mats):
    """Pack 2D f32 matrices into one [R, 128] buffer; each block starts at an 8-aligned row."""
    blocks, offs, r = [], [], 0
    for m in mats:
        m = jnp.asarray(m, jnp.float32)
        rows, cols = m.shape
        assert cols <= 128, cols
        pr = (-rows) % 8
        blocks.append(jnp.pad(m, ((0, pr), (0, 128 - cols))))
        offs.append(r)
        r += rows + pr
    return jnp.concatenate(blocks, axis=0), offs


# ---------------------------------------------------------------------------
# Pallas kernel: whole forward pass (tiny shapes -> grid-less, all in VMEM).
# ---------------------------------------------------------------------------
def _make_kernel(cfg):
    (C1, C2, K1, K2, L1, L1h, L2, H1, H2, NC,
     oP1, oWe, oW2, oW3, ob1, ob2, ob3) = cfg

    def kernel(x_ref, w1_ref, w2_ref, mp_ref, out_ref):
        B, Cin, _, Lp = x_ref.shape

        # ---- conv1: constant-compound (min,max)-plus-sum -----------------
        # x arrives as [B, Cin, 1, Lp] so the replication across output channels is a pure
        # sublane broadcast (no relayout); weights are pre-broadcast along lanes on the host.
        xrep = jnp.broadcast_to(x_ref[...], (B, Cin, C1, Lp))
        w1 = w1_ref[...]                       # [2*K1, Cin, C1, L1]  (first K1 = wmin, last K1 = wmax)
        x0 = xrep[:, :, :, 0:L1]
        mmin = x0 + w1[0]
        mmax = x0 + w1[K1]
        for k in range(1, K1):
            xs = xrep[:, :, :, k:k + L1]
            mmin = jnp.minimum(mmin, xs + w1[k])
            mmax = jnp.maximum(mmax, xs + w1[K1 + k])
        comp = LAMBDA * mmin + (1.0 - LAMBDA) * mmax            # [B, Cin, C1, L1]
        h1 = comp[:, 0]
        for ci in range(1, Cin):                                # channel sum = adds of whole tiles
            h1 = h1 + comp[:, ci]                               # [B, C1, L1]

        # ---- avg_pool1d(2,2) via precomputed pooling matrix (2-D MXU matmul) ----
        P1 = mp_ref[oP1:oP1 + L1, 0:L1h]
        h1p = jnp.dot(h1.reshape(B * C1, L1), P1,
                      preferred_element_type=jnp.float32).reshape(B, C1, L1h)

        # ---- conv2: constant-compound (min,max)-plus-sum -----------------
        hrep = jnp.broadcast_to(h1p[:, :, None, :], (B, C1, C2, L1h))
        w2 = w2_ref[...]                       # [2*K2, C1, C2, L2]
        h0 = hrep[:, :, :, 0:L2]
        mmin2 = h0 + w2[0]
        mmax2 = h0 + w2[K2]
        for k in range(1, K2):
            hs = hrep[:, :, :, k:k + L2]
            mmin2 = jnp.minimum(mmin2, hs + w2[k])
            mmax2 = jnp.maximum(mmax2, hs + w2[K2 + k])
        comp2 = LAMBDA * mmin2 + (1.0 - LAMBDA) * mmax2         # [B, C1, C2, L2]
        y2 = comp2[:, 0]
        for ci in range(1, C1):
            y2 = y2 + comp2[:, ci]                              # [B, C2, L2]

        # ---- fused pool2 + channel-major flatten + fc1 (+ relu) -----------
        y2f = y2.reshape(B, C2 * L2)
        Weff = mp_ref[oWe:oWe + C2 * L2, 0:H1]                  # pool2+flatten+fc1 folded on host
        b1 = mp_ref[ob1:ob1 + 1, 0:H1]
        z = jnp.maximum(jnp.dot(y2f, Weff, preferred_element_type=jnp.float32) + b1, 0.0)

        # ---- fc2 (+relu), fc3 ---------------------------------------------
        Wf2 = mp_ref[oW2:oW2 + H1, 0:H2]
        b2 = mp_ref[ob2:ob2 + 1, 0:H2]
        z = jnp.maximum(jnp.dot(z, Wf2, preferred_element_type=jnp.float32) + b2, 0.0)

        Wf3 = mp_ref[oW3:oW3 + H2, 0:NC]
        b3 = mp_ref[ob3:ob3 + 1, 0:NC]
        out_ref[...] = jnp.dot(z, Wf3, preferred_element_type=jnp.float32) + b3

    return kernel


# ---------------------------------------------------------------------------
# Builder: prepares constants once, returns a jitted forward(x).
# ---------------------------------------------------------------------------
def make_tropical_lenet_forward(params, input_channels, input_length, padding=2):
    wmin1 = jnp.asarray(params["conv1_wmin"], jnp.float32)
    wmax1 = jnp.asarray(params["conv1_wmax"], jnp.float32)
    wmin2 = jnp.asarray(params["conv2_wmin"], jnp.float32)
    wmax2 = jnp.asarray(params["conv2_wmax"], jnp.float32)
    C1, Cin, K1 = wmin1.shape
    C2, _, K2 = wmin2.shape
    assert Cin == input_channels
    Lp = input_length + 2 * padding
    L1 = Lp - K1 + 1
    L1h = L1 // 2
    L2 = L1h - K2 + 1
    L2h = L2 // 2
    H1, lin = params["fc1_w"].shape
    H2 = params["fc2_w"].shape[0]
    NC = params["fc3_w"].shape[0]
    assert lin == C2 * L2h, (lin, C2, L2h)

    def lay_conv(w, Lout):
        # [Cout, Cinn, K] -> [K, Cinn, Cout, Lout]: weight at (ci, co) tile-position, pre-broadcast on lanes.
        wt = jnp.transpose(w, (2, 1, 0))
        return jnp.broadcast_to(wt[..., None], wt.shape + (Lout,))

    w1pack = jnp.concatenate([lay_conv(wmin1, L1), lay_conv(wmax1, L1)], axis=0)  # [2*K1, Cin, C1, L1]
    w2pack = jnp.concatenate([lay_conv(wmin2, L2), lay_conv(wmax2, L2)], axis=0)  # [2*K2, C1, C2, L2]

    # pool2 + channel-major flatten + fc1 folded into one [C2*L2, H1] effective weight:
    #   Weff[co*L2 + t, o] = 0.5 * fc1_w[o, co*L2h + t//2]  (for t < 2*L2h, else 0 -> floor pooling)
    fc1_wT = jnp.asarray(params["fc1_w"], jnp.float32).T          # [C2*L2h, H1]
    co = jnp.arange(C2)[:, None]
    t = jnp.arange(L2)[None, :]
    src = co * L2h + jnp.minimum(t // 2, L2h - 1)
    Weff = 0.5 * fc1_wT[src]                                      # [C2, L2, H1]
    Weff = jnp.where((t < 2 * L2h)[..., None], Weff, 0.0).reshape(C2 * L2, H1)

    matpack, offs = _pack_rows([
        _avg_pool_matrix(L1),                                     # P1
        Weff,                                                     # fused pool2/flatten/fc1
        jnp.asarray(params["fc2_w"], jnp.float32).T,
        jnp.asarray(params["fc3_w"], jnp.float32).T,
        jnp.asarray(params["fc1_b"], jnp.float32).reshape(1, -1),
        jnp.asarray(params["fc2_b"], jnp.float32).reshape(1, -1),
        jnp.asarray(params["fc3_b"], jnp.float32).reshape(1, -1),
    ])

    cfg = (C1, C2, K1, K2, L1, L1h, L2, H1, H2, NC, *offs)
    kernel = _make_kernel(cfg)
    vmem = pl.BlockSpec(memory_space=pltpu.MemorySpace.VMEM)

    @jax.jit
    def _forward(x, w1p, w2p, mp):
        x = x.astype(jnp.float32)
        B = x.shape[0]
        xp = jnp.pad(x, ((0, 0), (0, 0), (padding, padding))).reshape(B, Cin, 1, Lp)
        return pl.pallas_call(
            kernel,
            out_shape=jax.ShapeDtypeStruct((B, NC), jnp.float32),
            in_specs=[vmem, vmem, vmem, vmem],
            out_specs=vmem,
            # TODO(synk): grid-less single-TC launch; add a parallel batch grid axis for large B (v7x).
        )(xp, w1p, w2p, mp)

    return lambda x: _forward(x, w1pack, w2pack, matpack)


# ---------------------------------------------------------------------------
# Pure-JAX reference (same assumed semantics) for a correctness check.
# ---------------------------------------------------------------------------
def reference_forward(x, params, padding=2, lam=LAMBDA):
    def compound_conv1d(xin, wmin, wmax, pad):
        xp = jnp.pad(xin, ((0, 0), (0, 0), (pad, pad)))
        Bb = xin.shape[0]
        Cout, Cinn, K = wmin.shape
        Lo = xp.shape[-1] - K + 1
        mn = jnp.full((Bb, Cout, Cinn, Lo), jnp.inf, jnp.float32)
        mx = jnp.full((Bb, Cout, Cinn, Lo), -jnp.inf, jnp.float32)
        for k in range(K):
            xs = xp[:, None, :, k:k + Lo]
            mn = jnp.minimum(mn, xs + wmin[None, :, :, k, None])
            mx = jnp.maximum(mx, xs + wmax[None, :, :, k, None])
        return jnp.sum(lam * mn + (1.0 - lam) * mx, axis=2)

    def avg_pool2(h):
        Bb, C, Lh = h.shape
        return h[..., :(Lh // 2) * 2].reshape(Bb, C, Lh // 2, 2).mean(-1)

    h = avg_pool2(compound_conv1d(x, params["conv1_wmin"], params["conv1_wmax"], padding))
    y = avg_pool2(compound_conv1d(h, params["conv2_wmin"], params["conv2_wmax"], 0))
    z = y.reshape(y.shape[0], -1)
    z = jnp.maximum(z @ params["fc1_w"].T + params["fc1_b"], 0.0)
    z = jnp.maximum(z @ params["fc2_w"].T + params["fc2_b"], 0.0)
    return z @ params["fc3_w"].T + params["fc3_b"]


if __name__ == "__main__":
    # Small instantiation of ConstantCompoundTropicalLeNet1(input_channels=2, num_classes=10,
    #   linear_size=16*7, first_layer_kernel_size=5, second_layer_kernel_size=3)
    # length trace: 32 --pad2,k5--> 32 --pool--> 16 --k3--> 14 --pool--> 7
    B, Cin, L = 2, 2, 32
    K1, K2 = 5, 3
    padding = 2
    num_classes = 10
    linear_size = 16 * 7

    key = jax.random.PRNGKey(0)
    ks = jax.random.split(key, 14)
    params = {
        "conv1_wmin": 0.1 * jax.random.normal(ks[0], (6, Cin, K1), jnp.float32),
        "conv1_wmax": 0.1 * jax.random.normal(ks[1], (6, Cin, K1), jnp.float32),
        "conv2_wmin": 0.1 * jax.random.normal(ks[2], (16, 6, K2), jnp.float32),
        "conv2_wmax": 0.1 * jax.random.normal(ks[3], (16, 6, K2), jnp.float32),
        "fc1_w": 0.1 * jax.random.normal(ks[4], (120, linear_size), jnp.float32),
        "fc1_b": 0.1 * jax.random.normal(ks[5], (120,), jnp.float32),
        "fc2_w": 0.1 * jax.random.normal(ks[6], (84, 120), jnp.float32),
        "fc2_b": 0.1 * jax.random.normal(ks[7], (84,), jnp.float32),
        "fc3_w": 0.1 * jax.random.normal(ks[8], (num_classes, 84), jnp.float32),
        "fc3_b": 0.1 * jax.random.normal(ks[9], (num_classes,), jnp.float32),
    }
    x = jax.random.normal(ks[10], (B, Cin, L), jnp.float32)

    fwd = make_tropical_lenet_forward(params, Cin, L, padding=padding)
    out = jax.block_until_ready(fwd(x))
    ref = jax.block_until_ready(reference_forward(x, params, padding=padding))

    assert out.shape == (B, num_classes), out.shape
    if not jnp.allclose(out, ref, atol=2e-3, rtol=2e-3):
        raise AssertionError(
            f"Pallas output mismatch, max abs err = {float(jnp.max(jnp.abs(out - ref)))}")
    print("KERNEL_OK")
</pallas_src>

<mosaic_0001>
module attributes {stable_mosaic.version = 11 : i64} {
  func.func @kernel(%arg0: memref<2x2x1x36xf32, #tpu.memory_space<vmem>>, %arg1: memref<10x2x6x32xf32, #tpu.memory_space<vmem>>, %arg2: memref<6x6x16x14xf32, #tpu.memory_space<vmem>>, %arg3: memref<488x128xf32, #tpu.memory_space<vmem>>, %arg4: memref<2x10xf32, #tpu.memory_space<vmem>>) attributes {dimension_semantics = [], scalar_prefetch = 0 : i64, scratch_operands = 0 : i64, tpu.core_type = #tpu.core_type<tc>} {
    %c0 = arith.constant 0 : index
    %c0_0 = arith.constant 0 : index
    %c0_1 = arith.constant 0 : index
    %c0_2 = arith.constant 0 : index
    %0 = vector.load %arg0[%c0, %c0_0, %c0_1, %c0_2] : memref<2x2x1x36xf32, #tpu.memory_space<vmem>>, vector<2x2x1x36xf32>
    %1 = vector.shape_cast %0 : vector<2x2x1x36xf32> to vector<2x2x1x36xf32>
    %2 = vector.broadcast %1 : vector<2x2x1x36xf32> to vector<2x2x6x36xf32>
    %c0_3 = arith.constant 0 : index
    %c0_4 = arith.constant 0 : index
    %c0_5 = arith.constant 0 : index
    %c0_6 = arith.constant 0 : index
    %3 = vector.load %arg1[%c0_3, %c0_4, %c0_5, %c0_6] : memref<10x2x6x32xf32, #tpu.memory_space<vmem>>, vector<10x2x6x32xf32>
    %4 = vector.extract_strided_slice %2 {offsets = [0, 0, 0, 0], sizes = [2, 2, 6, 32], strides = [1, 1, 1, 1]} : vector<2x2x6x36xf32> to vector<2x2x6x32xf32>
    %5 = vector.extract_strided_slice %3 {offsets = [0, 0, 0, 0], sizes = [1, 2, 6, 32], strides = [1, 1, 1, 1]} : vector<10x2x6x32xf32> to vector<1x2x6x32xf32>
    %6 = vector.shape_cast %5 : vector<1x2x6x32xf32> to vector<2x6x32xf32>
    %7 = vector.shape_cast %6 : vector<2x6x32xf32> to vector<1x2x6x32xf32>
    %8 = vector.broadcast %7 : vector<1x2x6x32xf32> to vector<2x2x6x32xf32>
    %9 = arith.addf %4, %8 : vector<2x2x6x32xf32>
    %10 = vector.extract_strided_slice %3 {offsets = [5, 0, 0, 0], sizes = [1, 2, 6, 32], strides = [1, 1, 1, 1]} : vector<10x2x6x32xf32> to vector<1x2x6x32xf32>
    %11 = vector.shape_cast %10 : vector<1x2x6x32xf32> to vector<2x6x32xf32>
    %12 = vector.shape_cast %11 : vector<2x6x32xf32> to vector<1x2x6x32xf32>
    %13 = vector.broadcast %12 : vector<1x2x6x32xf32> to vector<2x2x6x32xf32>
    %14 = arith.addf %4, %13 : vector<2x2x6x32xf32>
    %15 = vector.extract_strided_slice %2 {offsets = [0, 0, 0, 1], sizes = [2, 2, 6, 32], strides = [1, 1, 1, 1]} : vector<2x2x6x36xf32> to vector<2x2x6x32xf32>
    %16 = vector.extract_strided_slice %3 {offsets = [1, 0, 0, 0], sizes = [1, 2, 6, 32], strides = [1, 1, 1, 1]} : vector<10x2x6x32xf32> to vector<1x2x6x32xf32>
    %17 = vector.shape_cast %16 : vector<1x2x6x32xf32> to vector<2x6x32xf32>
    %18 = vector.shape_cast %17 : vector<2x6x32xf32> to vector<1x2x6x32xf32>
    %19 = vector.broadcast %18 : vector<1x2x6x32xf32> to vector<2x2x6x32xf32>
    %20 = arith.addf %15, %19 : vector<2x2x6x32xf32>
    %21 = arith.minimumf %9, %20 : vector<2x2x6x32xf32>
    %22 = vector.extract_strided_slice %3 {offsets = [6, 0, 0, 0], sizes = [1, 2, 6, 32], strides = [1, 1, 1, 1]} : vector<10x2x6x32xf32> to vector<1x2x6x32xf32>
    %23 = vector.shape_cast %22 : vector<1x2x6x32xf32> to vector<2x6x32xf32>
    %24 = vector.shape_cast %23 : vector<2x6x32xf32> to vector<1x2x6x32xf32>
    %25 = vector.broadcast %24 : vector<1x2x6x32xf32> to vector<2x2x6x32xf32>
    %26 = arith.addf %15, %25 : vector<2x2x6x32xf32>
    %27 = arith.maximumf %14, %26 : vector<2x2x6x32xf32>
    %28 = vector.extract_strided_slice %2 {offsets = [0, 0, 0, 2], sizes = [2, 2, 6, 32], strides = [1, 1, 1, 1]} : vector<2x2x6x36xf32> to vector<2x2x6x32xf32>
    %29 = vector.extract_strided_slice %3 {offsets = [2, 0, 0, 0], sizes = [1, 2, 6, 32], strides = [1, 1, 1, 1]} : vector<10x2x6x32xf32> to vector<1x2x6x32xf32>
    %30 = vector.shape_cast %29 : vector<1x2x6x32xf32> to vector<2x6x32xf32>
    %31 = vector.shape_cast %30 : vector<2x6x32xf32> to vector<1x2x6x32xf32>
    %32 = vector.broadcast %31 : vector<1x2x6x32xf32> to vector<2x2x6x32xf32>
    %33 = arith.addf %28, %32 : vector<2x2x6x32xf32>
    %34 = arith.minimumf %21, %33 : vector<2x2x6x32xf32>
    %35 = vector.extract_strided_slice %3 {offsets = [7, 0, 0, 0], sizes = [1, 2, 6, 32], strides = [1, 1, 1, 1]} : vector<10x2x6x32xf32> to vector<1x2x6x32xf32>
    %36 = vector.shape_cast %35 : vector<1x2x6x32xf32> to vector<2x6x32xf32>
    %37 = vector.shape_cast %36 : vector<2x6x32xf32> to vector<1x2x6x32xf32>
    %38 = vector.broadcast %37 : vector<1x2x6x32xf32> to vector<2x2x6x32xf32>
    %39 = arith.addf %28, %38 : vector<2x2x6x32xf32>
    %40 = arith.maximumf %27, %39 : vector<2x2x6x32xf32>
    %41 = vector.extract_strided_slice %2 {offsets = [0, 0, 0, 3], sizes = [2, 2, 6, 32], strides = [1, 1, 1, 1]} : vector<2x2x6x36xf32> to vector<2x2x6x32xf32>
    %42 = vector.extract_strided_slice %3 {offsets = [3, 0, 0, 0], sizes = [1, 2, 6, 32], strides = [1, 1, 1, 1]} : vector<10x2x6x32xf32> to vector<1x2x6x32xf32>
    %43 = vector.shape_cast %42 : vector<1x2x6x32xf32> to vector<2x6x32xf32>
    %44 = vector.shape_cast %43 : vector<2x6x32xf32> to vector<1x2x6x32xf32>
    %45 = vector.broadcast %44 : vector<1x2x6x32xf32> to vector<2x2x6x32xf32>
    %46 = arith.addf %41, %45 : vector<2x2x6x32xf32>
    %47 = arith.minimumf %34, %46 : vector<2x2x6x32xf32>
    %48 = vector.extract_strided_slice %3 {offsets = [8, 0, 0, 0], sizes = [1, 2, 6, 32], strides = [1, 1, 1, 1]} : vector<10x2x6x32xf32> to vector<1x2x6x32xf32>
    %49 = vector.shape_cast %48 : vector<1x2x6x32xf32> to vector<2x6x32xf32>
    %50 = vector.shape_cast %49 : vector<2x6x32xf32> to vector<1x2x6x32xf32>
    %51 = vector.broadcast %50 : vector<1x2x6x32xf32> to vector<2x2x6x32xf32>
    %52 = arith.addf %41, %51 : vector<2x2x6x32xf32>
    %53 = arith.maximumf %40, %52 : vector<2x2x6x32xf32>
    %54 = vector.extract_strided_slice %2 {offsets = [0, 0, 0, 4], sizes = [2, 2, 6, 32], strides = [1, 1, 1, 1]} : vector<2x2x6x36xf32> to vector<2x2x6x32xf32>
    %55 = vector.extract_strided_slice %3 {offsets = [4, 0, 0, 0], sizes = [1, 2, 6, 32], strides = [1, 1, 1, 1]} : vector<10x2x6x32xf32> to vector<1x2x6x32xf32>
    %56 = vector.shape_cast %55 : vector<1x2x6x32xf32> to vector<2x6x32xf32>
    %57 = vector.shape_cast %56 : vector<2x6x32xf32> to vector<1x2x6x32xf32>
    %58 = vector.broadcast %57 : vector<1x2x6x32xf32> to vector<2x2x6x32xf32>
    %59 = arith.addf %54, %58 : vector<2x2x6x32xf32>
    %60 = arith.minimumf %47, %59 : vector<2x2x6x32xf32>
    %61 = vector.extract_strided_slice %3 {offsets = [9, 0, 0, 0], sizes = [1, 2, 6, 32], strides = [1, 1, 1, 1]} : vector<10x2x6x32xf32> to vector<1x2x6x32xf32>
    %62 = vector.shape_cast %61 : vector<1x2x6x32xf32> to vector<2x6x32xf32>
    %63 = vector.shape_cast %62 : vector<2x6x32xf32> to vector<1x2x6x32xf32>
    %64 = vector.broadcast %63 : vector<1x2x6x32xf32> to vector<2x2x6x32xf32>
    %65 = arith.addf %54, %64 : vector<2x2x6x32xf32>
    %66 = arith.maximumf %53, %65 : vector<2x2x6x32xf32>
    %cst = arith.constant 5.000000e-01 : f32
    %67 = vector.broadcast %cst : f32 to vector<2x2x6x32xf32>
    %68 = arith.mulf %67, %60 : vector<2x2x6x32xf32>
    %cst_7 = arith.constant 5.000000e-01 : f32
    %69 = vector.broadcast %cst_7 : f32 to vector<2x2x6x32xf32>
    %70 = arith.mulf %69, %66 : vector<2x2x6x32xf32>
    %71 = arith.addf %68, %70 : vector<2x2x6x32xf32>
    %72 = vector.extract_strided_slice %71 {offsets = [0, 0, 0, 0], sizes = [2, 1, 6, 32], strides = [1, 1, 1, 1]} : vector<2x2x6x32xf32> to vector<2x1x6x32xf32>
    %73 = vector.shape_cast %72 : vector<2x1x6x32xf32> to vector<2x6x32xf32>
    %74 = vector.extract_strided_slice %71 {offsets = [0, 1, 0, 0], sizes = [2, 1, 6, 32], strides = [1, 1, 1, 1]} : vector<2x2x6x32xf32> to vector<2x1x6x32xf32>
    %75 = vector.shape_cast %74 : vector<2x1x6x32xf32> to vector<2x6x32xf32>
    %76 = arith.addf %73, %75 : vector<2x6x32xf32>
    %c0_8 = arith.constant 0 : index
    %c0_9 = arith.constant 0 : index
    %77 = vector.load %arg3[%c0_8, %c0_9] : memref<488x128xf32, #tpu.memory_space<vmem>>, vector<32x16xf32>
    %78 = vector.shape_cast %76 : vector<2x6x32xf32> to vector<12x32xf32>
    %cst_10 = arith.constant dense<0.000000e+00> : vector<12x16xf32>
    %79 = tpu.matmul %78, %77, %cst_10 {dimension_numbers = #tpu.dot_dimension_numbers<[1], [0], [0], [1], [0, 0, 1, 1], [], []>} : vector<12x32xf32>, vector<32x16xf32>, vector<12x16xf32> -> vector<12x16xf32>
    %80 = vector.shape_cast %79 : vector<12x16xf32> to vector<2x6x16xf32>
    %81 = vector.shape_cast %80 : vector<2x6x16xf32> to vector<2x6x1x16xf32>
    %82 = vector.shape_cast %81 : vector<2x6x1x16xf32> to vector<2x6x1x16xf32>
    %83 = vector.broadcast %82 : vector<2x6x1x16xf32> to vector<2x6x16x16xf32>
    %c0_11 = arith.constant 0 : index
    %c0_12 = arith.constant 0 : index
    %c0_13 = arith.constant 0 : index
    %c0_14 = arith.constant 0 : index
    %84 = vector.load %arg2[%c0_11, %c0_12, %c0_13, %c0_14] : memref<6x6x16x14xf32, #tpu.memory_space<vmem>>, vector<6x6x16x14xf32>
    %85 = vector.extract_strided_slice %83 {offsets = [0, 0, 0, 0], sizes = [2, 6, 16, 14], strides = [1, 1, 1, 1]} : vector<2x6x16x16xf32> to vector<2x6x16x14xf32>
    %86 = vector.extract_strided_slice %84 {offsets = [0, 0, 0, 0], sizes = [1, 6, 16, 14], strides = [1, 1, 1, 1]} : vector<6x6x16x14xf32> to vector<1x6x16x14xf32>
    %87 = vector.shape_cast %86 : vector<1x6x16x14xf32> to vector<6x16x14xf32>
    %88 = vector.shape_cast %87 : vector<6x16x14xf32> to vector<1x6x16x14xf32>
    %89 = vector.broadcast %88 : vector<1x6x16x14xf32> to vector<2x6x16x14xf32>
    %90 = arith.addf %85, %89 : vector<2x6x16x14xf32>
    %91 = vector.extract_strided_slice %84 {offsets = [3, 0, 0, 0], sizes = [1, 6, 16, 14], strides = [1, 1, 1, 1]} : vector<6x6x16x14xf32> to vector<1x6x16x14xf32>
    %92 = vector.shape_cast %91 : vector<1x6x16x14xf32> to vector<6x16x14xf32>
    %93 = vector.shape_cast %92 : vector<6x16x14xf32> to vector<1x6x16x14xf32>
    %94 = vector.broadcast %93 : vector<1x6x16x14xf32> to vector<2x6x16x14xf32>
    %95 = arith.addf %85, %94 : vector<2x6x16x14xf32>
    %96 = vector.extract_strided_slice %83 {offsets = [0, 0, 0, 1], sizes = [2, 6, 16, 14], strides = [1, 1, 1, 1]} : vector<2x6x16x16xf32> to vector<2x6x16x14xf32>
    %97 = vector.extract_strided_slice %84 {offsets = [1, 0, 0, 0], sizes = [1, 6, 16, 14], strides = [1, 1, 1, 1]} : vector<6x6x16x14xf32> to vector<1x6x16x14xf32>
    %98 = vector.shape_cast %97 : vector<1x6x16x14xf32> to vector<6x16x14xf32>
    %99 = vector.shape_cast %98 : vector<6x16x14xf32> to vector<1x6x16x14xf32>
    %100 = vector.broadcast %99 : vector<1x6x16x14xf32> to vector<2x6x16x14xf32>
    %101 = arith.addf %96, %100 : vector<2x6x16x14xf32>
    %102 = arith.minimumf %90, %101 : vector<2x6x16x14xf32>
    %103 = vector.extract_strided_slice %84 {offsets = [4, 0, 0, 0], sizes = [1, 6, 16, 14], strides = [1, 1, 1, 1]} : vector<6x6x16x14xf32> to vector<1x6x16x14xf32>
    %104 = vector.shape_cast %103 : vector<1x6x16x14xf32> to vector<6x16x14xf32>
    %105 = vector.shape_cast %104 : vector<6x16x14xf32> to vector<1x6x16x14xf32>
    %106 = vector.broadcast %105 : vector<1x6x16x14xf32> to vector<2x6x16x14xf32>
    %107 = arith.addf %96, %106 : vector<2x6x16x14xf32>
    %108 = arith.maximumf %95, %107 : vector<2x6x16x14xf32>
    %109 = vector.extract_strided_slice %83 {offsets = [0, 0, 0, 2], sizes = [2, 6, 16, 14], strides = [1, 1, 1, 1]} : vector<2x6x16x16xf32> to vector<2x6x16x14xf32>
    %110 = vector.extract_strided_slice %84 {offsets = [2, 0, 0, 0], sizes = [1, 6, 16, 14], strides = [1, 1, 1, 1]} : vector<6x6x16x14xf32> to vector<1x6x16x14xf32>
    %111 = vector.shape_cast %110 : vector<1x6x16x14xf32> to vector<6x16x14xf32>
    %112 = vector.shape_cast %111 : vector<6x16x14xf32> to vector<1x6x16x14xf32>
    %113 = vector.broadcast %112 : vector<1x6x16x14xf32> to vector<2x6x16x14xf32>
    %114 = arith.addf %109, %113 : vector<2x6x16x14xf32>
    %115 = arith.minimumf %102, %114 : vector<2x6x16x14xf32>
    %116 = vector.extract_strided_slice %84 {offsets = [5, 0, 0, 0], sizes = [1, 6, 16, 14], strides = [1, 1, 1, 1]} : vector<6x6x16x14xf32> to vector<1x6x16x14xf32>
    %117 = vector.shape_cast %116 : vector<1x6x16x14xf32> to vector<6x16x14xf32>
    %118 = vector.shape_cast %117 : vector<6x16x14xf32> to vector<1x6x16x14xf32>
    %119 = vector.broadcast %118 : vector<1x6x16x14xf32> to vector<2x6x16x14xf32>
    %120 = arith.addf %109, %119 : vector<2x6x16x14xf32>
    %121 = arith.maximumf %108, %120 : vector<2x6x16x14xf32>
    %cst_15 = arith.constant 5.000000e-01 : f32
    %122 = vector.broadcast %cst_15 : f32 to vector<2x6x16x14xf32>
    %123 = arith.mulf %122, %115 : vector<2x6x16x14xf32>
    %cst_16 = arith.constant 5.000000e-01 : f32
    %124 = vector.broadcast %cst_16 : f32 to vector<2x6x16x14xf32>
    %125 = arith.mulf %124, %121 : vector<2x6x16x14xf32>
    %126 = arith.addf %123, %125 : vector<2x6x16x14xf32>
    %127 = vector.extract_strided_slice %126 {offsets = [0, 0, 0, 0], sizes = [2, 1, 16, 14], strides = [1, 1, 1, 1]} : vector<2x6x16x14xf32> to vector<2x1x16x14xf32>
    %128 = vector.shape_cast %127 : vector<2x1x16x14xf32> to vector<2x16x14xf32>
    %129 = vector.extract_strided_slice %126 {offsets = [0, 1, 0, 0], sizes = [2, 1, 16, 14], strides = [1, 1, 1, 1]} : vector<2x6x16x14xf32> to vector<2x1x16x14xf32>
    %130 = vector.shape_cast %129 : vector<2x1x16x14xf32> to vector<2x16x14xf32>
    %131 = arith.addf %128, %130 : vector<2x16x14xf32>
    %132 = vector.extract_strided_slice %126 {offsets = [0, 2, 0, 0], sizes = [2, 1, 16, 14], strides = [1, 1, 1, 1]} : vector<2x6x16x14xf32> to vector<2x1x16x14xf32>
    %133 = vector.shape_cast %132 : vector<2x1x16x14xf32> to vector<2x16x14xf32>
    %134 = arith.addf %131, %133 : vector<2x16x14xf32>
    %135 = vector.extract_strided_slice %126 {offsets = [0, 3, 0, 0], sizes = [2, 1, 16, 14], strides = [1, 1, 1, 1]} : vector<2x6x16x14xf32> to vector<2x1x16x14xf32>
    %136 = vector.shape_cast %135 : vector<2x1x16x14xf32> to vector<2x16x14xf32>
    %137 = arith.addf %134, %136 : vector<2x16x14xf32>
    %138 = vector.extract_strided_slice %126 {offsets = [0, 4, 0, 0], sizes = [2, 1, 16, 14], strides = [1, 1, 1, 1]} : vector<2x6x16x14xf32> to vector<2x1x16x14xf32>
    %139 = vector.shape_cast %138 : vector<2x1x16x14xf32> to vector<2x16x14xf32>
    %140 = arith.addf %137, %139 : vector<2x16x14xf32>
    %141 = vector.extract_strided_slice %126 {offsets = [0, 5, 0, 0], sizes = [2, 1, 16, 14], strides = [1, 1, 1, 1]} : vector<2x6x16x14xf32> to vector<2x1x16x14xf32>
    %142 = vector.shape_cast %141 : vector<2x1x16x14xf32> to vector<2x16x14xf32>
    %143 = arith.addf %140, %142 : vector<2x16x14xf32>
    %144 = vector.shape_cast %143 : vector<2x16x14xf32> to vector<2x224xf32>
    %c32 = arith.constant 32 : index
    %c0_17 = arith.constant 0 : index
    %145 = vector.load %arg3[%c32, %c0_17] : memref<488x128xf32, #tpu.memory_space<vmem>>, vector<224x120xf32>
    %c464 = arith.constant 464 : index
    %c0_18 = arith.constant 0 : index
    %146 = vector.load %arg3[%c464, %c0_18] : memref<488x128xf32, #tpu.memory_space<vmem>>, vector<1x120xf32>
    %cst_19 = arith.constant dense<0.000000e+00> : vector<2x120xf32>
    %147 = tpu.matmul %144, %145, %cst_19 {dimension_numbers = #tpu.dot_dimension_numbers<[1], [0], [0], [1], [0, 0, 1, 1], [], []>} : vector<2x224xf32>, vector<224x120xf32>, vector<2x120xf32> -> vector<2x120xf32>
    %148 = vector.broadcast %146 : vector<1x120xf32> to vector<2x120xf32>
    %149 = arith.addf %147, %148 : vector<2x120xf32>
    %cst_20 = arith.constant 0.000000e+00 : f32
    %150 = vector.broadcast %cst_20 : f32 to vector<2x120xf32>
    %151 = arith.maximumf %149, %150 : vector<2x120xf32>
    %c256 = arith.constant 256 : index
    %c0_21 = arith.constant 0 : index
    %152 = vector.load %arg3[%c256, %c0_21] : memref<488x128xf32, #tpu.memory_space<vmem>>, vector<120x84xf32>
    %c472 = arith.constant 472 : index
    %c0_22 = arith.constant 0 : index
    %153 = vector.load %arg3[%c472, %c0_22] : memref<488x128xf32, #tpu.memory_space<vmem>>, vector<1x84xf32>
    %cst_23 = arith.constant dense<0.000000e+00> : vector<2x84xf32>
    %154 = tpu.matmul %151, %152, %cst_23 {dimension_numbers = #tpu.dot_dimension_numbers<[1], [0], [0], [1], [0, 0, 1, 1], [], []>} : vector<2x120xf32>, vector<120x84xf32>, vector<2x84xf32> -> vector<2x84xf32>
    %155 = vector.broadcast %153 : vector<1x84xf32> to vector<2x84xf32>
    %156 = arith.addf %154, %155 : vector<2x84xf32>
    %cst_24 = arith.constant 0.000000e+00 : f32
    %157 = vector.broadcast %cst_24 : f32 to vector<2x84xf32>
    %158 = arith.maximumf %156, %157 : vector<2x84xf32>
    %c376 = arith.constant 376 : index
    %c0_25 = arith.constant 0 : index
    %159 = vector.load %arg3[%c376, %c0_25] : memref<488x128xf32, #tpu.memory_space<vmem>>, vector<84x10xf32>
    %c480 = arith.constant 480 : index
    %c0_26 = arith.constant 0 : index
    %160 = vector.load %arg3[%c480, %c0_26] : memref<488x128xf32, #tpu.memory_space<vmem>>, vector<1x10xf32>
    %cst_27 = arith.constant dense<0.000000e+00> : vector<2x10xf32>
    %161 = tpu.matmul %158, %159, %cst_27 {dimension_numbers = #tpu.dot_dimension_numbers<[1], [0], [0], [1], [0, 0, 1, 1], [], []>} : vector<2x84xf32>, vector<84x10xf32>, vector<2x10xf32> -> vector<2x10xf32>
    %162 = vector.broadcast %160 : vector<1x10xf32> to vector<2x10xf32>
    %163 = arith.addf %161, %162 : vector<2x10xf32>
    %c0_28 = arith.constant 0 : index
    %c0_29 = arith.constant 0 : index
    %164 = vector.load %arg4[%c0_28, %c0_29] : memref<2x10xf32, #tpu.memory_space<vmem>>, vector<2x10xf32>
    tpu.vector_store %arg4[%c0_28, %c0_29], %163 {strides = array<i32>} : memref<2x10xf32, #tpu.memory_space<vmem>>, vector<2x10xf32>,
    return
  }
}

</mosaic_0001>

<llo_original>
// kernel: _forward.1
$region0: #{_forward.1}
  #allocation0 [shape = 'u32[]', space=smem, size = 0x4, offset = 0x4, fixed_abs, tag = 'smem constant byte address 0x4 - core index']
  #allocation1 [shape = 'u32[144,128]{1,0:T(1,128)}', space=vmem, size = 0x12000, scoped, tag = 'internal scratch']
  %s0 = inlined_call_operand.vmem [shape: f32[2,2,1,36], index: 0, kind: input, shape index: {}]
  %s1 = inlined_call_operand.vmem [shape: f32[10,2,6,32], index: 1, kind: input, shape index: {}]
  %s2 = inlined_call_operand.hbm [shape: f32[6,6,16,14], index: 2, kind: input, shape index: {}]
  %s3 = inlined_call_operand.hbm [shape: f32[488,128], index: 3, kind: input, shape index: {}]
  %s4 = inlined_call_operand.hbm [shape: f32[2,10], index: 4, kind: output, shape index: {}]
  %s5 = sld [smem:[#allocation0]]
  $region34: #{_forward.1} parent=0
    _
  %s7 = ssub.s32 1, %s5
  %s8 = scalar_select 0, %s7, %s5
  $region1: #{_forward.1} parent=0
    #allocation2 [shape = 'u8[294912]{0}', space=vmem, size = 0x48000, scoped, tag = 'input window, operand 2, single buffered']
    #allocation3 [shape = 's32[1]{0}', space=sflag, size = 0x4, scoped, tag = 'scoped memory for _forward.1']
    #allocation4 [shape = 's32[1]{0}', space=sflag, size = 0x4, scoped, tag = 'scoped memory for _forward.1']
    #allocation5 [shape = 'u8[249856]{0}', space=vmem, size = 0x3d000, scoped, tag = 'input window, operand 3, single buffered']
    #allocation6 [shape = 's32[1]{0}', space=sflag, size = 0x4, scoped, tag = 'scoped memory for _forward.1']
    #allocation7 [shape = 'u8[1024]{0}', space=vmem, size = 0x400, scoped, tag = 'output window, operand 0, single buffered']
    %9 = vsyncpa [#allocation3], 0
    %10 = vsyncpa [#allocation6], 0
    %11 = vsyncpa [#allocation4], 0
    // Predicated region
    $region2: #{_forward.1} parent=1 // pred_check
      _
    $region3: #{_forward.1} parent=1 // pred_check_branch
      %13 = sbr.rel (0) target = $region5
    $region4: #{_forward.1} parent=1 // pred_region
      _
    $region5: #{_forward.1} parent=1 // pred_fallthru
      _
    // Predicated region
    $region6: #{_forward.1} parent=1 // pred_check
      _
    $region7: #{_forward.1} parent=1 // pred_check_branch
      %15 = sbr.rel (0) target = $region9
    $region8: #{_forward.1} parent=1 // pred_region
      _
    $region9: #{_forward.1} parent=1 // pred_fallthru
      _
    // Predicated region
    $region10: #{_forward.1} parent=1 // pred_check
      _
    $region11: #{_forward.1} parent=1 // pred_check_branch
      %17 = sbr.rel (0) target = $region13
    $region12: #{_forward.1} parent=1 // pred_region
      %s19 = ssub.s32 9216, 9216
      %20 = vsyncadd [#allocation3], %s19
      %s21 = sshll.u32 [#allocation2], 4
      %s22 = int_to_ptr.vmem [resolvable:$true] %s21
      %27 = dma.hbm_to_vmem [thread:$0]  %s2, 9216, %s22, [#allocation3], 128, 128, 8
    $region13: #{_forward.1} parent=1 // pred_fallthru
      _
    // Predicated region
    $region14: #{_forward.1} parent=1 // pred_check
      _
    $region15: #{_forward.1} parent=1 // pred_check_branch
      %29 = sbr.rel (0) target = $region17
    $region16: #{_forward.1} parent=1 // pred_region
      %s31 = ssub.s32 7808, 7808
      %32 = vsyncadd [#allocation6], %s31
      %s33 = sshll.u32 [#allocation5], 4
      %s34 = int_to_ptr.vmem [resolvable:$true] %s33
      %39 = dma.hbm_to_vmem [thread:$0]  %s3, 7808, %s34, [#allocation6], 128, 128, 8
    $region17: #{_forward.1} parent=1 // pred_fallthru
      _
    // Predicated region
    $region18: #{_forward.1} parent=1 // pred_check
      _
    $region19: #{_forward.1} parent=1 // pred_check_branch
      %41 = sbr.rel (0) target = $region21
    $region20: #{_forward.1} parent=1 // pred_region
      %42 = dma.done [#allocation3], 9216
    $region21: #{_forward.1} parent=1 // pred_fallthru
      _
    // Predicated region
    $region22: #{_forward.1} parent=1 // pred_check
      _
    $region23: #{_forward.1} parent=1 // pred_check_branch
      %44 = sbr.rel (0) target = $region25
    $region24: #{_forward.1} parent=1 // pred_region
      %45 = dma.done [#allocation6], 7808
    $region25: #{_forward.1} parent=1 // pred_fallthru
      _
    %v46 = vld [vmem:[%s0] sm:$0x1]
    %v47 = vld [vmem:[%s0 + $0x1] sm:$0x1]
    %v48 = vld [vmem:[%s0 + $0x2] sm:$0x1]
    %v49 = vld [vmem:[%s0 + $0x3] sm:$0x1]
    %v50 = vld [vmem:[%s1] sm:$0x3f]
    %v51 = vld [vmem:[%s1 + $0x8] sm:$0x3f]
    %v52 = vld [vmem:[%s1 + $0x10] sm:$0x3f]
    %v53 = vld [vmem:[%s1 + $0x18] sm:$0x3f]
    %v54 = vld [vmem:[%s1 + $0x20] sm:$0x3f]
    %v55 = vld [vmem:[%s1 + $0x28] sm:$0x3f]
    %v56 = vld [vmem:[%s1 + $0x30] sm:$0x3f]
    %v57 = vld [vmem:[%s1 + $0x38] sm:$0x3f]
    %v58 = vld [vmem:[%s1 + $0x40] sm:$0x3f]
    %v59 = vld [vmem:[%s1 + $0x48] sm:$0x3f]
    %v60 = vld [vmem:[%s1 + $0x50] sm:$0x3f]
    %v61 = vld [vmem:[%s1 + $0x58] sm:$0x3f]
    %v62 = vld [vmem:[%s1 + $0x60] sm:$0x3f]
    %v63 = vld [vmem:[%s1 + $0x68] sm:$0x3f]
    %v64 = vld [vmem:[%s1 + $0x70] sm:$0x3f]
    %v65 = vld [vmem:[%s1 + $0x78] sm:$0x3f]
    %v66 = vld [vmem:[%s1 + $0x80] sm:$0x3f]
    %v67 = vld [vmem:[%s1 + $0x88] sm:$0x3f]
    %v68 = vld [vmem:[%s1 + $0x90] sm:$0x3f]
    %v69 = vld [vmem:[%s1 + $0x98] sm:$0x3f]
    %v74 = vlaneseq
    %v75 = vshrl.u32 %v74, 7
    %v76 = vsub.s32 0, %v75
    %v77 = vrot.slane %v46, %v76
    %v78 = vlaneseq
    %v79 = vshrl.u32 %v78, 7
    %v80 = vsub.s32 0, %v79
    %v81 = vrot.slane %v47, %v80
    %v82 = vlaneseq
    %v83 = vshrl.u32 %v82, 7
    %v84 = vsub.s32 0, %v83
    %v85 = vrot.slane %v48, %v84
    %v86 = vlaneseq
    %v87 = vshrl.u32 %v86, 7
    %v88 = vsub.s32 0, %v87
    %v89 = vrot.slane %v49, %v88
    %v94 = vadd.f32 %v77, %v50
    %v95 = vadd.f32 %v81, %v51
    %v96 = vadd.f32 %v85, %v50
    %v97 = vadd.f32 %v89, %v51
    %v98 = vadd.f32 %v77, %v60
    %v99 = vadd.f32 %v81, %v61
    %v100 = vadd.f32 %v85, %v60
    %v101 = vadd.f32 %v89, %v61
    %104 = vrot.lane.b32.xlu0 %v52, 1
    %v105 = vpop.permute.xlu0 %104
    %106 = vrot.lane.b32.xlu0 %v53, 1
    %v107 = vpop.permute.xlu0 %106
    %v110 = vadd.f32 %v77, %v105
    %v111 = vadd.f32 %v81, %v107
    %v112 = vadd.f32 %v85, %v105
    %v113 = vadd.f32 %v89, %v107
    %118 = vrot.lane.b32.xlu0 %v110, 127
    %v119 = vpop.permute.xlu0 %118
    %120 = vrot.lane.b32.xlu0 %v111, 127
    %v121 = vpop.permute.xlu0 %120
    %122 = vrot.lane.b32.xlu0 %v112, 127
    %v123 = vpop.permute.xlu0 %122
    %124 = vrot.lane.b32.xlu0 %v113, 127
    %v125 = vpop.permute.xlu0 %124
    %v130 = vmin.f32 %v94, %v119
    %v131 = vmin.f32 %v95, %v121
    %v132 = vmin.f32 %v96, %v123
    %v133 = vmin.f32 %v97, %v125
    %136 = vrot.lane.b32.xlu0 %v62, 1
    %v137 = vpop.permute.xlu0 %136
    %138 = vrot.lane.b32.xlu0 %v63, 1
    %v139 = vpop.permute.xlu0 %138
    %v142 = vadd.f32 %v77, %v137
    %v143 = vadd.f32 %v81, %v139
    %v144 = vadd.f32 %v85, %v137
    %v145 = vadd.f32 %v89, %v139
    %150 = vrot.lane.b32.xlu0 %v142, 127
    %v151 = vpop.permute.xlu0 %150
    %152 = vrot.lane.b32.xlu0 %v143, 127
    %v153 = vpop.permute.xlu0 %152
    %154 = vrot.lane.b32.xlu0 %v144, 127
    %v155 = vpop.permute.xlu0 %154
    %156 = vrot.lane.b32.xlu0 %v145, 127
    %v157 = vpop.permute.xlu0 %156
    %v162 = vmax.f32 %v98, %v151
    %v163 = vmax.f32 %v99, %v153
    %v164 = vmax.f32 %v100, %v155
    %v165 = vmax.f32 %v101, %v157
    %168 = vrot.lane.b32.xlu0 %v54, 2
    %v169 = vpop.permute.xlu0 %168
    %170 = vrot.lane.b32.xlu0 %v55, 2
    %v171 = vpop.permute.xlu0 %170
    %v174 = vadd.f32 %v77, %v169
    %v175 = vadd.f32 %v81, %v171
    %v176 = vadd.f32 %v85, %v169
    %v177 = vadd.f32 %v89, %v171
    %182 = vrot.lane.b32.xlu0 %v174, 126
    %v183 = vpop.permute.xlu0 %182
    %184 = vrot.lane.b32.xlu0 %v175, 126
    %v185 = vpop.permute.xlu0 %184
    %186 = vrot.lane.b32.xlu0 %v176, 126
    %v187 = vpop.permute.xlu0 %186
    %188 = vrot.lane.b32.xlu0 %v177, 126
    %v189 = vpop.permute.xlu0 %188
    %v194 = vmin.f32 %v130, %v183
    %v195 = vmin.f32 %v131, %v185
    %v196 = vmin.f32 %v132, %v187
    %v197 = vmin.f32 %v133, %v189
    %200 = vrot.lane.b32.xlu0 %v64, 2
    %v201 = vpop.permute.xlu0 %200
    %202 = vrot.lane.b32.xlu0 %v65, 2
    %v203 = vpop.permute.xlu0 %202
    %v206 = vadd.f32 %v77, %v201
    %v207 = vadd.f32 %v81, %v203
    %v208 = vadd.f32 %v85, %v201
    %v209 = vadd.f32 %v89, %v203
    %214 = vrot.lane.b32.xlu0 %v206, 126
    %v215 = vpop.permute.xlu0 %214
    %216 = vrot.lane.b32.xlu0 %v207, 126
    %v217 = vpop.permute.xlu0 %216
    %218 = vrot.lane.b32.xlu0 %v208, 126
    %v219 = vpop.permute.xlu0 %218
    %220 = vrot.lane.b32.xlu0 %v209, 126
    %v221 = vpop.permute.xlu0 %220
    %v226 = vmax.f32 %v162, %v215
    %v227 = vmax.f32 %v163, %v217
    %v228 = vmax.f32 %v164, %v219
    %v229 = vmax.f32 %v165, %v221
    %232 = vrot.lane.b32.xlu0 %v56, 3
    %v233 = vpop.permute.xlu0 %232
    %234 = vrot.lane.b32.xlu0 %v57, 3
    %v235 = vpop.permute.xlu0 %234
    %v238 = vadd.f32 %v77, %v233
    %v239 = vadd.f32 %v81, %v235
    %v240 = vadd.f32 %v85, %v233
    %v241 = vadd.f32 %v89, %v235
    %246 = vrot.lane.b32.xlu0 %v238, 125
    %v247 = vpop.permute.xlu0 %246
    %248 = vrot.lane.b32.xlu0 %v239, 125
    %v249 = vpop.permute.xlu0 %248
    %250 = vrot.lane.b32.xlu0 %v240, 125
    %v251 = vpop.permute.xlu0 %250
    %252 = vrot.lane.b32.xlu0 %v241, 125
    %v253 = vpop.permute.xlu0 %252
    %v258 = vmin.f32 %v194, %v247
    %v259 = vmin.f32 %v195, %v249
    %v260 = vmin.f32 %v196, %v251
    %v261 = vmin.f32 %v197, %v253
    %264 = vrot.lane.b32.xlu0 %v66, 3
    %v265 = vpop.permute.xlu0 %264
    %266 = vrot.lane.b32.xlu0 %v67, 3
    %v267 = vpop.permute.xlu0 %266
    %v270 = vadd.f32 %v77, %v265
    %v271 = vadd.f32 %v81, %v267
    %v272 = vadd.f32 %v85, %v265
    %v273 = vadd.f32 %v89, %v267
    %278 = vrot.lane.b32.xlu0 %v270, 125
    %v279 = vpop.permute.xlu0 %278
    %280 = vrot.lane.b32.xlu0 %v271, 125
    %v281 = vpop.permute.xlu0 %280
    %282 = vrot.lane.b32.xlu0 %v272, 125
    %v283 = vpop.permute.xlu0 %282
    %284 = vrot.lane.b32.xlu0 %v273, 125
    %v285 = vpop.permute.xlu0 %284
    %v290 = vmax.f32 %v226, %v279
    %v291 = vmax.f32 %v227, %v281
    %v292 = vmax.f32 %v228, %v283
    %v293 = vmax.f32 %v229, %v285
    %296 = vrot.lane.b32.xlu0 %v58, 4
    %v297 = vpop.permute.xlu0 %296
    %298 = vrot.lane.b32.xlu0 %v59, 4
    %v299 = vpop.permute.xlu0 %298
    %v302 = vadd.f32 %v77, %v297
    %v303 = vadd.f32 %v81, %v299
    %v304 = vadd.f32 %v85, %v297
    %v305 = vadd.f32 %v89, %v299
    %310 = vrot.lane.b32.xlu0 %v302, 124
    %v311 = vpop.permute.xlu0 %310
    %312 = vrot.lane.b32.xlu0 %v303, 124
    %v313 = vpop.permute.xlu0 %312
    %314 = vrot.lane.b32.xlu0 %v304, 124
    %v315 = vpop.permute.xlu0 %314
    %316 = vrot.lane.b32.xlu0 %v305, 124
    %v317 = vpop.permute.xlu0 %316
    %v322 = vmin.f32 %v258, %v311
    %v323 = vmin.f32 %v259, %v313
    %v324 = vmin.f32 %v260, %v315
    %v325 = vmin.f32 %v261, %v317
    %328 = vrot.lane.b32.xlu0 %v68, 4
    %v329 = vpop.permute.xlu0 %328
    %330 = vrot.lane.b32.xlu0 %v69, 4
    %v331 = vpop.permute.xlu0 %330
    %v334 = vadd.f32 %v77, %v329
    %v335 = vadd.f32 %v81, %v331
    %v336 = vadd.f32 %v85, %v329
    %v337 = vadd.f32 %v89, %v331
    %342 = vrot.lane.b32.xlu0 %v334, 124
    %v343 = vpop.permute.xlu0 %342
    %344 = vrot.lane.b32.xlu0 %v335, 124
    %v345 = vpop.permute.xlu0 %344
    %346 = vrot.lane.b32.xlu0 %v336, 124
    %v347 = vpop.permute.xlu0 %346
    %348 = vrot.lane.b32.xlu0 %v337, 124
    %v349 = vpop.permute.xlu0 %348
    %v354 = vmax.f32 %v290, %v343
    %v355 = vmax.f32 %v291, %v345
    %v356 = vmax.f32 %v292, %v347
    %v357 = vmax.f32 %v293, %v349
    %v358 = vmul.f32 %v322, 0.5
    %v359 = vmul.f32 %v323, 0.5
    %v360 = vmul.f32 %v324, 0.5
    %v361 = vmul.f32 %v325, 0.5
    %v362 = vmul.f32 %v354, 0.5
    %v363 = vmul.f32 %v355, 0.5
    %v364 = vmul.f32 %v356, 0.5
    %v365 = vmul.f32 %v357, 0.5
    %v366 = vadd.f32 %v358, %v362
    %v367 = vadd.f32 %v359, %v363
    %v368 = vadd.f32 %v360, %v364
    %v369 = vadd.f32 %v361, %v365
    %v370 = vadd.f32 %v366, %v367
    %v371 = vadd.f32 %v368, %v369
    %v372 = vld [vmem:[#allocation5] sm:$0xff]
    %v373 = vld [vmem:[#allocation5 + $0x8] sm:$0xff]
    %v374 = vld [vmem:[#allocation5 + $0x10] sm:$0xff]
    %v375 = vld [vmem:[#allocation5 + $0x18] sm:$0xff]
    %v378 = vcombine.high %v370, %v370
    %v380 = vunpack.c.l.s4 1983009808
    %v381 = vunpack.c.0.s8 %v380
    %v382 = vlaneseq
    %v383 = vshrl.u32 %v382, 7
    %v384 = vsub.s32 %v381, %v383
    %v385 = vrot.slane %v370, %v384
    %v387 = vunpack.c.l.s4 1983009808
    %v388 = vunpack.c.0.s8 %v387
    %v389 = vlaneseq
    %v390 = vshrl.u32 %v389, 7
    %v391 = vsub.s32 %v388, %v390
    %v392 = vrot.slane %v378, %v391
    %v393 = vcombine.high %v385, %v385
    %v394 = vcombine.high %v371, %v371
    %v396 = vunpack.c.l.s4 1983009808
    %v397 = vunpack.c.0.s8 %v396
    %v398 = vlaneseq
    %v399 = vshrl.u32 %v398, 7
    %v400 = vsub.s32 %v397, %v399
    %v401 = vrot.slane %v371, %v400
    %v403 = vunpack.c.l.s4 1983009808
    %v404 = vunpack.c.0.s8 %v403
    %v405 = vlaneseq
    %v406 = vshrl.u32 %v405, 7
    %v407 = vsub.s32 %v404, %v406
    %v408 = vrot.slane %v394, %v407
    %v409 = vcombine.high %v401, %v401
    %v410 = vcombine.low %v385, %v393
    %v411 = vcombine.low %v392, %v401
    %v413 = vunpack.c.l.s4 1983009808
    %v414 = vunpack.c.0.s8 %v413
    %v415 = vlaneseq
    %v416 = vshrl.u32 %v415, 7
    %v417 = vsub.s32 %v414, %v416
    %v418 = vrot.slane %v410, %v417
    %v420 = vunpack.c.l.s4 1983009808
    %v421 = vunpack.c.0.s8 %v420
    %v422 = vlaneseq
    %v423 = vshrl.u32 %v422, 7
    %v424 = vsub.s32 %v421, %v423
    %v425 = vrot.slane %v411, %v424
    %v426 = vcombine.low %v418, %v425
    %v427 = vcombine.low %v409, %v408
    %v429 = vunpack.c.l.s4 1983009808
    %v430 = vunpack.c.0.s8 %v429
    %v431 = vlaneseq
    %v432 = vshrl.u32 %v431, 7
    %v433 = vsub.s32 %v430, %v432
    %v434 = vrot.slane %v427, %v433
    %vm435 = vcmask 261120
    %v436 = vsel %vm435, %v426, 0
    %v438 = vsel %vm435, %v434, 0
    %440 = vmatprep.subr.mxu0 0.0
    %441 = vmatpush1.msra.mxu0 0.0
    %442 = vmatprep.subr.mxu0 0.0
    %443 = vmatpush1.msra.mxu0 0.0
    %444 = vmatprep.subr.mxu0 0.0
    %445 = vmatpush1.msra.mxu0 0.0
    %446 = vmatprep.subr.mxu0 0.0
    %447 = vmatpush1.msra.mxu0 0.0
    %448 = vmatprep.subr.mxu0 0.0
    %449 = vmatpush1.msra.mxu0 0.0
    %450 = vmatprep.subr.mxu0 0.0
    %451 = vmatpush1.msra.mxu0 0.0
    %452 = vmatprep.subr.mxu0 0.0
    %453 = vmatpush1.msra.mxu0 0.0
    %454 = vmatprep.subr.mxu0 0.0
    %455 = vmatpush1.msra.mxu0 0.0
    %456 = vmatprep.subr.mxu0 0.0
    %457 = vmatpush1.msra.mxu0 0.0
    %458 = vmatprep.subr.mxu0 0.0
    %459 = vmatpush1.msra.mxu0 0.0
    %460 = vmatprep.subr.mxu0 0.0
    %461 = vmatpush1.msra.mxu0 0.0
    %462 = vmatprep.subr.mxu0 0.0
    %463 = vmatpush1.msra.mxu0 0.0
    %464 = vmatprep.subr.mxu0 0.0
    %465 = vmatpush1.msra.mxu0 %v375
    %466 = vmatprep.subr.mxu0 0.0
    %467 = vmatpush1.msra.mxu0 %v374
    %468 = vmatprep.subr.mxu0 0.0
    %469 = vmatpush1.msra.mxu0 %v373
    %470 = vmatprep.subr.mxu0 0.0
    %471 = vmatpush1.msra.mxu0 %v372
    %472 = vmatprep.subr.mxu0 0.0
    %473 = vmatpush2.msra.mxu0 0.0
    %474 = vmatprep.subr.mxu0 0.0
    %475 = vmatpush2.msra.mxu0 0.0
    %476 = vmatprep.subr.mxu0 0.0
    %477 = vmatpush2.msra.mxu0 0.0
    %478 = vmatprep.subr.mxu0 0.0
    %479 = vmatpush2.msra.mxu0 0.0
    %480 = vmatprep.subr.mxu0 0.0
    %481 = vmatpush2.msra.mxu0 0.0
    %482 = vmatprep.subr.mxu0 0.0
    %483 = vmatpush2.msra.mxu0 0.0
    %484 = vmatprep.subr.mxu0 0.0
    %485 = vmatpush2.msra.mxu0 0.0
    %486 = vmatprep.subr.mxu0 0.0
    %487 = vmatpush2.msra.mxu0 0.0
    %488 = vmatprep.subr.mxu0 0.0
    %489 = vmatpush2.msra.mxu0 0.0
    %490 = vmatprep.subr.mxu0 0.0
    %491 = vmatpush2.msra.mxu0 0.0
    %492 = vmatprep.subr.mxu0 0.0
    %493 = vmatpush2.msra.mxu0 0.0
    %494 = vmatprep.subr.mxu0 0.0
    %495 = vmatpush2.msra.mxu0 0.0
    %496 = vmatprep.subr.mxu0 0.0
    %497 = vmatpush2.msra.mxu0 0.0
    %498 = vmatprep.subr.mxu0 0.0
    %499 = vmatpush2.msra.mxu0 0.0
    %500 = vmatprep.subr.mxu0 0.0
    %501 = vmatpush2.msra.mxu0 0.0
    %502 = vmatprep.subr.mxu0 0.0
    %503 = vmatpush2.msra.mxu0 0.0
    %504 = vmatprep.mubr.f32.mxu0 0.0
    %505 = vmatmul.mubr.f32.gmra.mxu0 %v436
    %v506 = vpop.f32.mrf.mxu0
    %v507 = vadd.f32 0.0, %v506
    %v508 = vpop.f32.mrf.mxu0
    %509 = vmatprep.mubr.f32.mxu0 0.0
    %510 = vmatmul.mubr.f32.gmra.mxu0 %v438
    %v511 = vpop.f32.mrf.mxu0
    %v512 = vadd.f32 0.0, %v511
    %v513 = vpop.f32.mrf.mxu0
    %514 = vdwg.mxu0
    %v517 = vcombine.high %v507, %v507
    %v519 = vunpack.c.l.s4 1966171168
    %v520 = vunpack.c.0.s8 %v519
    %v521 = vlaneseq
    %v522 = vshrl.u32 %v521, 7
    %v523 = vsub.s32 %v520, %v522
    %v524 = vrot.slane %v507, %v523
    %v526 = vunpack.c.l.s4 1966171168
    %v527 = vunpack.c.0.s8 %v526
    %v528 = vlaneseq
    %v529 = vshrl.u32 %v528, 7
    %v530 = vsub.s32 %v527, %v529
    %v531 = vrot.slane %v517, %v530
    %v532 = vcombine.high %v524, %v524
    %v533 = vcombine.high %v531, %v531
    %v535 = vunpack.c.l.s4 1966171168
    %v536 = vunpack.c.0.s8 %v535
    %v537 = vlaneseq
    %v538 = vshrl.u32 %v537, 7
    %v539 = vsub.s32 %v536, %v538
    %v540 = vrot.slane %v524, %v539
    %v542 = vunpack.c.l.s4 1966171168
    %v543 = vunpack.c.0.s8 %v542
    %v544 = vlaneseq
    %v545 = vshrl.u32 %v544, 7
    %v546 = vsub.s32 %v543, %v545
    %v547 = vrot.slane %v531, %v546
    %v549 = vunpack.c.l.s4 1966171168
    %v550 = vunpack.c.0.s8 %v549
    %v551 = vlaneseq
    %v552 = vshrl.u32 %v551, 7
    %v553 = vsub.s32 %v550, %v552
    %v554 = vrot.slane %v532, %v553
    %v556 = vunpack.c.l.s4 1966171168
    %v557 = vunpack.c.0.s8 %v556
    %v558 = vlaneseq
    %v559 = vshrl.u32 %v558, 7
    %v560 = vsub.s32 %v557, %v559
    %v561 = vrot.slane %v533, %v560
    %v562 = vcombine.high %v540, %v540
    %v563 = vcombine.high %v547, %v547
    %v564 = vcombine.high %v554, %v554
    %v565 = vcombine.high %v561, %v561
    %v567 = vunpack.c.l.s4 1966171168
    %v568 = vunpack.c.0.s8 %v567
    %v569 = vlaneseq
    %v570 = vshrl.u32 %v569, 7
    %v571 = vsub.s32 %v568, %v570
    %v572 = vrot.slane %v512, %v571
    %v573 = vcombine.high %v572, %v572
    %v575 = vunpack.c.l.s4 1966171168
    %v576 = vunpack.c.0.s8 %v575
    %v577 = vlaneseq
    %v578 = vshrl.u32 %v577, 7
    %v579 = vsub.s32 %v576, %v578
    %v580 = vrot.slane %v572, %v579
    %v582 = vunpack.c.l.s4 1966171168
    %v583 = vunpack.c.0.s8 %v582
    %v584 = vlaneseq
    %v585 = vshrl.u32 %v584, 7
    %v586 = vsub.s32 %v583, %v585
    %v587 = vrot.slane %v573, %v586
    %v588 = vcombine.high %v580, %v580
    %v589 = vcombine.high %v587, %v587
    %v590 = vld [vmem:[#allocation2] sm:$0xff]
    %v591 = vld [vmem:[#allocation2 + $0x8] sm:$0xff]
    %v592 = vld [vmem:[#allocation2 + $0x10] sm:$0xff]
    %v593 = vld [vmem:[#allocation2 + $0x18] sm:$0xff]
    %v594 = vld [vmem:[#allocation2 + $0x20] sm:$0xff]
    %v595 = vld [vmem:[#allocation2 + $0x28] sm:$0xff]
    %v596 = vld [vmem:[#allocation2 + $0x30] sm:$0xff]
    %v597 = vld [vmem:[#allocation2 + $0x38] sm:$0xff]
    %v598 = vld [vmem:[#allocation2 + $0x40] sm:$0xff]
    %v599 = vld [vmem:[#allocation2 + $0x48] sm:$0xff]
    %v600 = vld [vmem:[#allocation2 + $0x50] sm:$0xff]
    %v601 = vld [vmem:[#allocation2 + $0x58] sm:$0xff]
    %v602 = vld [vmem:[#allocation2 + $0x60] sm:$0xff]
    %v603 = vld [vmem:[#allocation2 + $0x68] sm:$0xff]
    %v604 = vld [vmem:[#allocation2 + $0x70] sm:$0xff]
    %v605 = vld [vmem:[#allocation2 + $0x78] sm:$0xff]
    %v606 = vld [vmem:[#allocation2 + $0x80] sm:$0xff]
    %v607 = vld [vmem:[#allocation2 + $0x88] sm:$0xff]
    %v608 = vld [vmem:[#allocation2 + $0x90] sm:$0xff]
    %v609 = vld [vmem:[#allocation2 + $0x98] sm:$0xff]
    %v610 = vld [vmem:[#allocation2 + $0xa0] sm:$0xff]
    %v611 = vld [vmem:[#allocation2 + $0xa8] sm:$0xff]
    %v612 = vld [vmem:[#allocation2 + $0xb0] sm:$0xff]
    %v613 = vld [vmem:[#allocation2 + $0xb8] sm:$0xff]
    %v614 = vld [vmem:[#allocation2 + $0xc0] sm:$0xff]
    %v615 = vld [vmem:[#allocation2 + $0xc8] sm:$0xff]
    %v616 = vld [vmem:[#allocation2 + $0xd0] sm:$0xff]
    %v617 = vld [vmem:[#allocation2 + $0xd8] sm:$0xff]
    %v618 = vld [vmem:[#allocation2 + $0xe0] sm:$0xff]
    %v619 = vld [vmem:[#allocation2 + $0xe8] sm:$0xff]
    %v620 = vld [vmem:[#allocation2 + $0xf0] sm:$0xff]
    %v621 = vld [vmem:[#allocation2 + $0xf8] sm:$0xff]
    %v622 = vld [vmem:[#allocation2 + $0x100] sm:$0xff]
    %v623 = vld [vmem:[#allocation2 + $0x108] sm:$0xff]
    %v624 = vld [vmem:[#allocation2 + $0x110] sm:$0xff]
    %v625 = vld [vmem:[#allocation2 + $0x118] sm:$0xff]
    %v626 = vld [vmem:[#allocation2 + $0x120] sm:$0xff]
    %v627 = vld [vmem:[#allocation2 + $0x128] sm:$0xff]
    %v628 = vld [vmem:[#allocation2 + $0x130] sm:$0xff]
    %v629 = vld [vmem:[#allocation2 + $0x138] sm:$0xff]
    %v630 = vld [vmem:[#allocation2 + $0x140] sm:$0xff]
    %v631 = vld [vmem:[#allocation2 + $0x148] sm:$0xff]
    %v632 = vld [vmem:[#allocation2 + $0x150] sm:$0xff]
    %v633 = vld [vmem:[#allocation2 + $0x158] sm:$0xff]
    %v634 = vld [vmem:[#allocation2 + $0x160] sm:$0xff]
    %v635 = vld [vmem:[#allocation2 + $0x168] sm:$0xff]
    %v636 = vld [vmem:[#allocation2 + $0x170] sm:$0xff]
    %v637 = vld [vmem:[#allocation2 + $0x178] sm:$0xff]
    %v638 = vld [vmem:[#allocation2 + $0x180] sm:$0xff]
    %v639 = vld [vmem:[#allocation2 + $0x188] sm:$0xff]
    %v640 = vld [vmem:[#allocation2 + $0x190] sm:$0xff]
    %v641 = vld [vmem:[#allocation2 + $0x198] sm:$0xff]
    %v642 = vld [vmem:[#allocation2 + $0x1a0] sm:$0xff]
    %v643 = vld [vmem:[#allocation2 + $0x1a8] sm:$0xff]
    %v644 = vld [vmem:[#allocation2 + $0x1b0] sm:$0xff]
    %v645 = vld [vmem:[#allocation2 + $0x1b8] sm:$0xff]
    %v646 = vld [vmem:[#allocation2 + $0x1c0] sm:$0xff]
    %v647 = vld [vmem:[#allocation2 + $0x1c8] sm:$0xff]
    %v648 = vld [vmem:[#allocation2 + $0x1d0] sm:$0xff]
    %v649 = vld [vmem:[#allocation2 + $0x1d8] sm:$0xff]
    %v650 = vld [vmem:[#allocation2 + $0x1e0] sm:$0xff]
    %v651 = vld [vmem:[#allocation2 + $0x1e8] sm:$0xff]
    %v652 = vld [vmem:[#allocation2 + $0x1f0] sm:$0xff]
    %v653 = vld [vmem:[#allocation2 + $0x1f8] sm:$0xff]
    %v654 = vld [vmem:[#allocation2 + $0x200] sm:$0xff]
    %v655 = vld [vmem:[#allocation2 + $0x208] sm:$0xff]
    %v656 = vld [vmem:[#allocation2 + $0x210] sm:$0xff]
    %v657 = vld [vmem:[#allocation2 + $0x218] sm:$0xff]
    %v658 = vld [vmem:[#allocation2 + $0x220] sm:$0xff]
    %v659 = vld [vmem:[#allocation2 + $0x228] sm:$0xff]
    %v660 = vld [vmem:[#allocation2 + $0x230] sm:$0xff]
    %v661 = vld [vmem:[#allocation2 + $0x238] sm:$0xff]
    %v662 = vlaneseq
    %v663 = vshrl.u32 %v662, 7
    %v664 = vsub.s32 0, %v663
    %v665 = vrot.slane %v540, %v664
    %v666 = vlaneseq
    %v667 = vshrl.u32 %v666, 7
    %v668 = vsub.s32 0, %v667
    %v669 = vrot.slane %v554, %v668
    %v670 = vlaneseq
    %v671 = vshrl.u32 %v670, 7
    %v672 = vsub.s32 0, %v671
    %v673 = vrot.slane %v562, %v672
    %v674 = vlaneseq
    %v675 = vshrl.u32 %v674, 7
    %v676 = vsub.s32 0, %v675
    %v677 = vrot.slane %v564, %v676
    %v678 = vlaneseq
    %v679 = vshrl.u32 %v678, 7
    %v680 = vsub.s32 0, %v679
    %v681 = vrot.slane %v547, %v680
    %v682 = vlaneseq
    %v683 = vshrl.u32 %v682, 7
    %v684 = vsub.s32 0, %v683
    %v685 = vrot.slane %v561, %v684
    %v686 = vlaneseq
    %v687 = vshrl.u32 %v686, 7
    %v688 = vsub.s32 0, %v687
    %v689 = vrot.slane %v563, %v688
    %v690 = vlaneseq
    %v691 = vshrl.u32 %v690, 7
    %v692 = vsub.s32 0, %v691
    %v693 = vrot.slane %v565, %v692
    %v694 = vlaneseq
    %v695 = vshrl.u32 %v694, 7
    %v696 = vsub.s32 0, %v695
    %v697 = vrot.slane %v580, %v696
    %v698 = vlaneseq
    %v699 = vshrl.u32 %v698, 7
    %v700 = vsub.s32 0, %v699
    %v701 = vrot.slane %v587, %v700
    %v702 = vlaneseq
    %v703 = vshrl.u32 %v702, 7
    %v704 = vsub.s32 0, %v703
    %v705 = vrot.slane %v588, %v704
    %v706 = vlaneseq
    %v707 = vshrl.u32 %v706, 7
    %v708 = vsub.s32 0, %v707
    %v709 = vrot.slane %v589, %v708
    %v722 = vadd.f32 %v665, %v590
    %v723 = vadd.f32 %v665, %v591
    %v724 = vadd.f32 %v669, %v592
    %v725 = vadd.f32 %v669, %v593
    %v726 = vadd.f32 %v673, %v594
    %v727 = vadd.f32 %v673, %v595
    %v728 = vadd.f32 %v677, %v596
    %v729 = vadd.f32 %v677, %v597
    %v730 = vadd.f32 %v681, %v598
    %v731 = vadd.f32 %v681, %v599
    %v732 = vadd.f32 %v685, %v600
    %v733 = vadd.f32 %v685, %v601
    %v734 = vadd.f32 %v689, %v590
    %v735 = vadd.f32 %v689, %v591
    %v736 = vadd.f32 %v693, %v592
    %v737 = vadd.f32 %v693, %v593
    %v738 = vadd.f32 %v697, %v594
    %v739 = vadd.f32 %v697, %v595
    %v740 = vadd.f32 %v701, %v596
    %v741 = vadd.f32 %v701, %v597
    %v742 = vadd.f32 %v705, %v598
    %v743 = vadd.f32 %v705, %v599
    %v744 = vadd.f32 %v709, %v600
    %v745 = vadd.f32 %v709, %v601
    %v746 = vadd.f32 %v665, %v626
    %v747 = vadd.f32 %v665, %v627
    %v748 = vadd.f32 %v669, %v628
    %v749 = vadd.f32 %v669, %v629
    %v750 = vadd.f32 %v673, %v630
    %v751 = vadd.f32 %v673, %v631
    %v752 = vadd.f32 %v677, %v632
    %v753 = vadd.f32 %v677, %v633
    %v754 = vadd.f32 %v681, %v634
    %v755 = vadd.f32 %v681, %v635
    %v756 = vadd.f32 %v685, %v636
    %v757 = vadd.f32 %v685, %v637
    %v758 = vadd.f32 %v689, %v626
    %v759 = vadd.f32 %v689, %v627
    %v760 = vadd.f32 %v693, %v628
    %v761 = vadd.f32 %v693, %v629
    %v762 = vadd.f32 %v697, %v630
    %v763 = vadd.f32 %v697, %v631
    %v764 = vadd.f32 %v701, %v632
    %v765 = vadd.f32 %v701, %v633
    %v766 = vadd.f32 %v705, %v634
    %v767 = vadd.f32 %v705, %v635
    %v768 = vadd.f32 %v709, %v636
    %v769 = vadd.f32 %v709, %v637
    %782 = vrot.lane.b32.xlu0 %v602, 1
    %v783 = vpop.permute.xlu0 %782
    %784 = vrot.lane.b32.xlu0 %v603, 1
    %v785 = vpop.permute.xlu0 %784
    %786 = vrot.lane.b32.xlu0 %v604, 1
    %v787 = vpop.permute.xlu0 %786
    %788 = vrot.lane.b32.xlu0 %v605, 1
    %v789 = vpop.permute.xlu0 %788
    %790 = vrot.lane.b32.xlu0 %v606, 1
    %v791 = vpop.permute.xlu0 %790
    %792 = vrot.lane.b32.xlu0 %v607, 1
    %v793 = vpop.permute.xlu0 %792
    %794 = vrot.lane.b32.xlu0 %v608, 1
    %v795 = vpop.permute.xlu0 %794
    %796 = vrot.lane.b32.xlu0 %v609, 1
    %v797 = vpop.permute.xlu0 %796
    %798 = vrot.lane.b32.xlu0 %v610, 1
    %v799 = vpop.permute.xlu0 %798
    %800 = vrot.lane.b32.xlu0 %v611, 1
    %v801 = vpop.permute.xlu0 %800
    %802 = vrot.lane.b32.xlu0 %v612, 1
    %v803 = vpop.permute.xlu0 %802
    %804 = vrot.lane.b32.xlu0 %v613, 1
    %v805 = vpop.permute.xlu0 %804
    %v818 = vadd.f32 %v665, %v783
    %v819 = vadd.f32 %v665, %v785
    %v820 = vadd.f32 %v669, %v787
    %v821 = vadd.f32 %v669, %v789
    %v822 = vadd.f32 %v673, %v791
    %v823 = vadd.f32 %v673, %v793
    %v824 = vadd.f32 %v677, %v795
    %v825 = vadd.f32 %v677, %v797
    %v826 = vadd.f32 %v681, %v799
    %v827 = vadd.f32 %v681, %v801
    %v828 = vadd.f32 %v685, %v803
    %v829 = vadd.f32 %v685, %v805
    %v830 = vadd.f32 %v689, %v783
    %v831 = vadd.f32 %v689, %v785
    %v832 = vadd.f32 %v693, %v787
    %v833 = vadd.f32 %v693, %v789
    %v834 = vadd.f32 %v697, %v791
    %v835 = vadd.f32 %v697, %v793
    %v836 = vadd.f32 %v701, %v795
    %v837 = vadd.f32 %v701, %v797
    %v838 = vadd.f32 %v705, %v799
    %v839 = vadd.f32 %v705, %v801
    %v840 = vadd.f32 %v709, %v803
    %v841 = vadd.f32 %v709, %v805
    %866 = vrot.lane.b32.xlu0 %v818, 127
    %v867 = vpop.permute.xlu0 %866
    %868 = vrot.lane.b32.xlu0 %v819, 127
    %v869 = vpop.permute.xlu0 %868
    %870 = vrot.lane.b32.xlu0 %v820, 127
    %v871 = vpop.permute.xlu0 %870
    %872 = vrot.lane.b32.xlu0 %v821, 127
    %v873 = vpop.permute.xlu0 %872
    %874 = vrot.lane.b32.xlu0 %v822, 127
    %v875 = vpop.permute.xlu0 %874
    %876 = vrot.lane.b32.xlu0 %v823, 127
    %v877 = vpop.permute.xlu0 %876
    %878 = vrot.lane.b32.xlu0 %v824, 127
    %v879 = vpop.permute.xlu0 %878
    %880 = vrot.lane.b32.xlu0 %v825, 127
    %v881 = vpop.permute.xlu0 %880
    %882 = vrot.lane.b32.xlu0 %v826, 127
    %v883 = vpop.permute.xlu0 %882
    %884 = vrot.lane.b32.xlu0 %v827, 127
    %v885 = vpop.permute.xlu0 %884
    %886 = vrot.lane.b32.xlu0 %v828, 127
    %v887 = vpop.permute.xlu0 %886
    %888 = vrot.lane.b32.xlu0 %v829, 127
    %v889 = vpop.permute.xlu0 %888
    %890 = vrot.lane.b32.xlu0 %v830, 127
    %v891 = vpop.permute.xlu0 %890
    %892 = vrot.lane.b32.xlu0 %v831, 127
    %v893 = vpop.permute.xlu0 %892
    %894 = vrot.lane.b32.xlu0 %v832, 127
    %v895 = vpop.permute.xlu0 %894
    %896 = vrot.lane.b32.xlu0 %v833, 127
    %v897 = vpop.permute.xlu0 %896
    %898 = vrot.lane.b32.xlu0 %v834, 127
    %v899 = vpop.permute.xlu0 %898
    %900 = vrot.lane.b32.xlu0 %v835, 127
    %v901 = vpop.permute.xlu0 %900
    %902 = vrot.lane.b32.xlu0 %v836, 127
    %v903 = vpop.permute.xlu0 %902
    %904 = vrot.lane.b32.xlu0 %v837, 127
    %v905 = vpop.permute.xlu0 %904
    %906 = vrot.lane.b32.xlu0 %v838, 127
    %v907 = vpop.permute.xlu0 %906
    %908 = vrot.lane.b32.xlu0 %v839, 127
    %v909 = vpop.permute.xlu0 %908
    %910 = vrot.lane.b32.xlu0 %v840, 127
    %v911 = vpop.permute.xlu0 %910
    %912 = vrot.lane.b32.xlu0 %v841, 127
    %v913 = vpop.permute.xlu0 %912
    %v938 = vmin.f32 %v722, %v867
    %v939 = vmin.f32 %v723, %v869
    %v940 = vmin.f32 %v724, %v871
    %v941 = vmin.f32 %v725, %v873
    %v942 = vmin.f32 %v726, %v875
    %v943 = vmin.f32 %v727, %v877
    %v944 = vmin.f32 %v728, %v879
    %v945 = vmin.f32 %v729, %v881
    %v946 = vmin.f32 %v730, %v883
    %v947 = vmin.f32 %v731, %v885
    %v948 = vmin.f32 %v732, %v887
    %v949 = vmin.f32 %v733, %v889
    %v950 = vmin.f32 %v734, %v891
    %v951 = vmin.f32 %v735, %v893
    %v952 = vmin.f32 %v736, %v895
    %v953 = vmin.f32 %v737, %v897
    %v954 = vmin.f32 %v738, %v899
    %v955 = vmin.f32 %v739, %v901
    %v956 = vmin.f32 %v740, %v903
    %v957 = vmin.f32 %v741, %v905
    %v958 = vmin.f32 %v742, %v907
    %v959 = vmin.f32 %v743, %v909
    %v960 = vmin.f32 %v744, %v911
    %v961 = vmin.f32 %v745, %v913
    %974 = vrot.lane.b32.xlu0 %v638, 1
    %v975 = vpop.permute.xlu0 %974
    %976 = vrot.lane.b32.xlu0 %v639, 1
    %v977 = vpop.permute.xlu0 %976
    %978 = vrot.lane.b32.xlu0 %v640, 1
    %v979 = vpop.permute.xlu0 %978
    %980 = vrot.lane.b32.xlu0 %v641, 1
    %v981 = vpop.permute.xlu0 %980
    %982 = vrot.lane.b32.xlu0 %v642, 1
    %v983 = vpop.permute.xlu0 %982
    %984 = vrot.lane.b32.xlu0 %v643, 1
    %v985 = vpop.permute.xlu0 %984
    %986 = vrot.lane.b32.xlu0 %v644, 1
    %v987 = vpop.permute.xlu0 %986
    %988 = vrot.lane.b32.xlu0 %v645, 1
    %v989 = vpop.permute.xlu0 %988
    %990 = vrot.lane.b32.xlu0 %v646, 1
    %v991 = vpop.permute.xlu0 %990
    %992 = vrot.lane.b32.xlu0 %v647, 1
    %v993 = vpop.permute.xlu0 %992
    %994 = vrot.lane.b32.xlu0 %v648, 1
    %v995 = vpop.permute.xlu0 %994
    %996 = vrot.lane.b32.xlu0 %v649, 1
    %v997 = vpop.permute.xlu0 %996
    %v1010 = vadd.f32 %v665, %v975
    %v1011 = vadd.f32 %v665, %v977
    %v1012 = vadd.f32 %v669, %v979
    %v1013 = vadd.f32 %v669, %v981
    %v1014 = vadd.f32 %v673, %v983
    %v1015 = vadd.f32 %v673, %v985
    %v1016 = vadd.f32 %v677, %v987
    %v1017 = vadd.f32 %v677, %v989
    %v1018 = vadd.f32 %v681, %v991
    %v1019 = vadd.f32 %v681, %v993
    %v1020 = vadd.f32 %v685, %v995
    %v1021 = vadd.f32 %v685, %v997
    %v1022 = vadd.f32 %v689, %v975
    %v1023 = vadd.f32 %v689, %v977
    %v1024 = vadd.f32 %v693, %v979
    %v1025 = vadd.f32 %v693, %v981
    %v1026 = vadd.f32 %v697, %v983
    %v1027 = vadd.f32 %v697, %v985
    %v1028 = vadd.f32 %v701, %v987
    %v1029 = vadd.f32 %v701, %v989
    %v1030 = vadd.f32 %v705, %v991
    %v1031 = vadd.f32 %v705, %v993
    %v1032 = vadd.f32 %v709, %v995
    %v1033 = vadd.f32 %v709, %v997
    %1058 = vrot.lane.b32.xlu0 %v1010, 127
    %v1059 = vpop.permute.xlu0 %1058
    %1060 = vrot.lane.b32.xlu0 %v1011, 127
    %v1061 = vpop.permute.xlu0 %1060
    %1062 = vrot.lane.b32.xlu0 %v1012, 127
    %v1063 = vpop.permute.xlu0 %1062
    %1064 = vrot.lane.b32.xlu0 %v1013, 127
    %v1065 = vpop.permute.xlu0 %1064
    %1066 = vrot.lane.b32.xlu0 %v1014, 127
    %v1067 = vpop.permute.xlu0 %1066
    %1068 = vrot.lane.b32.xlu0 %v1015, 127
    %v1069 = vpop.permute.xlu0 %1068
    %1070 = vrot.lane.b32.xlu0 %v1016, 127
    %v1071 = vpop.permute.xlu0 %1070
    %1072 = vrot.lane.b32.xlu0 %v1017, 127
    %v1073 = vpop.permute.xlu0 %1072
    %1074 = vrot.lane.b32.xlu0 %v1018, 127
    %v1075 = vpop.permute.xlu0 %1074
    %1076 = vrot.lane.b32.xlu0 %v1019, 127
    %v1077 = vpop.permute.xlu0 %1076
    %1078 = vrot.lane.b32.xlu0 %v1020, 127
    %v1079 = vpop.permute.xlu0 %1078
    %1080 = vrot.lane.b32.xlu0 %v1021, 127
    %v1081 = vpop.permute.xlu0 %1080
    %1082 = vrot.lane.b32.xlu0 %v1022, 127
    %v1083 = vpop.permute.xlu0 %1082
    %1084 = vrot.lane.b32.xlu0 %v1023, 127
    %v1085 = vpop.permute.xlu0 %1084
    %1086 = vrot.lane.b32.xlu0 %v1024, 127
    %v1087 = vpop.permute.xlu0 %1086
    %1088 = vrot.lane.b32.xlu0 %v1025, 127
    %v1089 = vpop.permute.xlu0 %1088
    %1090 = vrot.lane.b32.xlu0 %v1026, 127
    %v1091 = vpop.permute.xlu0 %1090
    %1092 = vrot.lane.b32.xlu0 %v1027, 127
    %v1093 = vpop.permute.xlu0 %1092
    %1094 = vrot.lane.b32.xlu0 %v1028, 127
    %v1095 = vpop.permute.xlu0 %1094
    %1096 = vrot.lane.b32.xlu0 %v1029, 127
    %v1097 = vpop.permute.xlu0 %1096
    %1098 = vrot.lane.b32.xlu0 %v1030, 127
    %v1099 = vpop.permute.xlu0 %1098
    %1100 = vrot.lane.b32.xlu0 %v1031, 127
    %v1101 = vpop.permute.xlu0 %1100
    %1102 = vrot.lane.b32.xlu0 %v1032, 127
    %v1103 = vpop.permute.xlu0 %1102
    %1104 = vrot.lane.b32.xlu0 %v1033, 127
    %v1105 = vpop.permute.xlu0 %1104
    %v1130 = vmax.f32 %v746, %v1059
    %v1131 = vmax.f32 %v747, %v1061
    %v1132 = vmax.f32 %v748, %v1063
    %v1133 = vmax.f32 %v749, %v1065
    %v1134 = vmax.f32 %v750, %v1067
    %v1135 = vmax.f32 %v751, %v1069
    %v1136 = vmax.f32 %v752, %v1071
    %v1137 = vmax.f32 %v753, %v1073
    %v1138 = vmax.f32 %v754, %v1075
    %v1139 = vmax.f32 %v755, %v1077
    %v1140 = vmax.f32 %v756, %v1079
    %v1141 = vmax.f32 %v757, %v1081
    %v1142 = vmax.f32 %v758, %v1083
    %v1143 = vmax.f32 %v759, %v1085
    %v1144 = vmax.f32 %v760, %v1087
    %v1145 = vmax.f32 %v761, %v1089
    %v1146 = vmax.f32 %v762, %v1091
    %v1147 = vmax.f32 %v763, %v1093
    %v1148 = vmax.f32 %v764, %v1095
    %v1149 = vmax.f32 %v765, %v1097
    %v1150 = vmax.f32 %v766, %v1099
    %v1151 = vmax.f32 %v767, %v1101
    %v1152 = vmax.f32 %v768, %v1103
    %v1153 = vmax.f32 %v769, %v1105
    %1166 = vrot.lane.b32.xlu0 %v614, 2
    %v1167 = vpop.permute.xlu0 %1166
    %1168 = vrot.lane.b32.xlu0 %v615, 2
    %v1169 = vpop.permute.xlu0 %1168
    %1170 = vrot.lane.b32.xlu0 %v616, 2
    %v1171 = vpop.permute.xlu0 %1170
    %1172 = vrot.lane.b32.xlu0 %v617, 2
    %v1173 = vpop.permute.xlu0 %1172
    %1174 = vrot.lane.b32.xlu0 %v618, 2
    %v1175 = vpop.permute.xlu0 %1174
    %1176 = vrot.lane.b32.xlu0 %v619, 2
    %v1177 = vpop.permute.xlu0 %1176
    %1178 = vrot.lane.b32.xlu0 %v620, 2
    %v1179 = vpop.permute.xlu0 %1178
    %1180 = vrot.lane.b32.xlu0 %v621, 2
    %v1181 = vpop.permute.xlu0 %1180
    %1182 = vrot.lane.b32.xlu0 %v622, 2
    %v1183 = vpop.permute.xlu0 %1182
    %1184 = vrot.lane.b32.xlu0 %v623, 2
    %v1185 = vpop.permute.xlu0 %1184
    %1186 = vrot.lane.b32.xlu0 %v624, 2
    %v1187 = vpop.permute.xlu0 %1186
    %1188 = vrot.lane.b32.xlu0 %v625, 2
    %v1189 = vpop.permute.xlu0 %1188
    %v1202 = vadd.f32 %v665, %v1167
    %v1203 = vadd.f32 %v665, %v1169
    %v1204 = vadd.f32 %v669, %v1171
    %v1205 = vadd.f32 %v669, %v1173
    %v1206 = vadd.f32 %v673, %v1175
    %v1207 = vadd.f32 %v673, %v1177
    %v1208 = vadd.f32 %v677, %v1179
    %v1209 = vadd.f32 %v677, %v1181
    %v1210 = vadd.f32 %v681, %v1183
    %v1211 = vadd.f32 %v681, %v1185
    %v1212 = vadd.f32 %v685, %v1187
    %v1213 = vadd.f32 %v685, %v1189
    %v1214 = vadd.f32 %v689, %v1167
    %v1215 = vadd.f32 %v689, %v1169
    %v1216 = vadd.f32 %v693, %v1171
    %v1217 = vadd.f32 %v693, %v1173
    %v1218 = vadd.f32 %v697, %v1175
    %v1219 = vadd.f32 %v697, %v1177
    %v1220 = vadd.f32 %v701, %v1179
    %v1221 = vadd.f32 %v701, %v1181
    %v1222 = vadd.f32 %v705, %v1183
    %v1223 = vadd.f32 %v705, %v1185
    %v1224 = vadd.f32 %v709, %v1187
    %v1225 = vadd.f32 %v709, %v1189
    %1250 = vrot.lane.b32.xlu0 %v1202, 126
    %v1251 = vpop.permute.xlu0 %1250
    %1252 = vrot.lane.b32.xlu0 %v1203, 126
    %v1253 = vpop.permute.xlu0 %1252
    %1254 = vrot.lane.b32.xlu0 %v1204, 126
    %v1255 = vpop.permute.xlu0 %1254
    %1256 = vrot.lane.b32.xlu0 %v1205, 126
    %v1257 = vpop.permute.xlu0 %1256
    %1258 = vrot.lane.b32.xlu0 %v1206, 126
    %v1259 = vpop.permute.xlu0 %1258
    %1260 = vrot.lane.b32.xlu0 %v1207, 126
    %v1261 = vpop.permute.xlu0 %1260
    %1262 = vrot.lane.b32.xlu0 %v1208, 126
    %v1263 = vpop.permute.xlu0 %1262
    %1264 = vrot.lane.b32.xlu0 %v1209, 126
    %v1265 = vpop.permute.xlu0 %1264
    %1266 = vrot.lane.b32.xlu0 %v1210, 126
    %v1267 = vpop.permute.xlu0 %1266
    %1268 = vrot.lane.b32.xlu0 %v1211, 126
    %v1269 = vpop.permute.xlu0 %1268
    %1270 = vrot.lane.b32.xlu0 %v1212, 126
    %v1271 = vpop.permute.xlu0 %1270
    %1272 = vrot.lane.b32.xlu0 %v1213, 126
    %v1273 = vpop.permute.xlu0 %1272
    %1274 = vrot.lane.b32.xlu0 %v1214, 126
    %v1275 = vpop.permute.xlu0 %1274
    %1276 = vrot.lane.b32.xlu0 %v1215, 126
    %v1277 = vpop.permute.xlu0 %1276
    %1278 = vrot.lane.b32.xlu0 %v1216, 126
    %v1279 = vpop.permute.xlu0 %1278
    %1280 = vrot.lane.b32.xlu0 %v1217, 126
    %v1281 = vpop.permute.xlu0 %1280
    %1282 = vrot.lane.b32.xlu0 %v1218, 126
    %v1283 = vpop.permute.xlu0 %1282
    %1284 = vrot.lane.b32.xlu0 %v1219, 126
    %v1285 = vpop.permute.xlu0 %1284
    %1286 = vrot.lane.b32.xlu0 %v1220, 126
    %v1287 = vpop.permute.xlu0 %1286
    %1288 = vrot.lane.b32.xlu0 %v1221, 126
    %v1289 = vpop.permute.xlu0 %1288
    %1290 = vrot.lane.b32.xlu0 %v1222, 126
    %v1291 = vpop.permute.xlu0 %1290
    %1292 = vrot.lane.b32.xlu0 %v1223, 126
    %v1293 = vpop.permute.xlu0 %1292
    %1294 = vrot.lane.b32.xlu0 %v1224, 126
    %v1295 = vpop.permute.xlu0 %1294
    %1296 = vrot.lane.b32.xlu0 %v1225, 126
    %v1297 = vpop.permute.xlu0 %1296
    %v1322 = vmin.f32 %v938, %v1251
    %v1323 = vmin.f32 %v939, %v1253
    %v1324 = vmin.f32 %v940, %v1255
    %v1325 = vmin.f32 %v941, %v1257
    %v1326 = vmin.f32 %v942, %v1259
    %v1327 = vmin.f32 %v943, %v1261
    %v1328 = vmin.f32 %v944, %v1263
    %v1329 = vmin.f32 %v945, %v1265
    %v1330 = vmin.f32 %v946, %v1267
    %v1331 = vmin.f32 %v947, %v1269
    %v1332 = vmin.f32 %v948, %v1271
    %v1333 = vmin.f32 %v949, %v1273
    %v1334 = vmin.f32 %v950, %v1275
    %v1335 = vmin.f32 %v951, %v1277
    %v1336 = vmin.f32 %v952, %v1279
    %v1337 = vmin.f32 %v953, %v1281
    %v1338 = vmin.f32 %v954, %v1283
    %v1339 = vmin.f32 %v955, %v1285
    %v1340 = vmin.f32 %v956, %v1287
    %v1341 = vmin.f32 %v957, %v1289
    %v1342 = vmin.f32 %v958, %v1291
    %v1343 = vmin.f32 %v959, %v1293
    %v1344 = vmin.f32 %v960, %v1295
    %v1345 = vmin.f32 %v961, %v1297
    %1358 = vrot.lane.b32.xlu0 %v650, 2
    %v1359 = vpop.permute.xlu0 %1358
    %1360 = vrot.lane.b32.xlu0 %v651, 2
    %v1361 = vpop.permute.xlu0 %1360
    %1362 = vrot.lane.b32.xlu0 %v652, 2
    %v1363 = vpop.permute.xlu0 %1362
    %1364 = vrot.lane.b32.xlu0 %v653, 2
    %v1365 = vpop.permute.xlu0 %1364
    %1366 = vrot.lane.b32.xlu0 %v654, 2
    %v1367 = vpop.permute.xlu0 %1366
    %1368 = vrot.lane.b32.xlu0 %v655, 2
    %v1369 = vpop.permute.xlu0 %1368
    %1370 = vrot.lane.b32.xlu0 %v656, 2
    %v1371 = vpop.permute.xlu0 %1370
    %1372 = vrot.lane.b32.xlu0 %v657, 2
    %v1373 = vpop.permute.xlu0 %1372
    %1374 = vrot.lane.b32.xlu0 %v658, 2
    %v1375 = vpop.permute.xlu0 %1374
    %1376 = vrot.lane.b32.xlu0 %v659, 2
    %v1377 = vpop.permute.xlu0 %1376
    %1378 = vrot.lane.b32.xlu0 %v660, 2
    %v1379 = vpop.permute.xlu0 %1378
    %1380 = vrot.lane.b32.xlu0 %v661, 2
    %v1381 = vpop.permute.xlu0 %1380
    %v1394 = vadd.f32 %v665, %v1359
    %v1395 = vadd.f32 %v665, %v1361
    %v1396 = vadd.f32 %v669, %v1363
    %v1397 = vadd.f32 %v669, %v1365
    %v1398 = vadd.f32 %v673, %v1367
    %v1399 = vadd.f32 %v673, %v1369
    %v1400 = vadd.f32 %v677, %v1371
    %v1401 = vadd.f32 %v677, %v1373
    %v1402 = vadd.f32 %v681, %v1375
    %v1403 = vadd.f32 %v681, %v1377
    %v1404 = vadd.f32 %v685, %v1379
    %v1405 = vadd.f32 %v685, %v1381
    %v1406 = vadd.f32 %v689, %v1359
    %v1407 = vadd.f32 %v689, %v1361
    %v1408 = vadd.f32 %v693, %v1363
    %v1409 = vadd.f32 %v693, %v1365
    %v1410 = vadd.f32 %v697, %v1367
    %v1411 = vadd.f32 %v697, %v1369
    %v1412 = vadd.f32 %v701, %v1371
    %v1413 = vadd.f32 %v701, %v1373
    %v1414 = vadd.f32 %v705, %v1375
    %v1415 = vadd.f32 %v705, %v1377
    %v1416 = vadd.f32 %v709, %v1379
    %v1417 = vadd.f32 %v709, %v1381
    %1442 = vrot.lane.b32.xlu0 %v1394, 126
    %v1443 = vpop.permute.xlu0 %1442
    %1444 = vrot.lane.b32.xlu0 %v1395, 126
    %v1445 = vpop.permute.xlu0 %1444
    %1446 = vrot.lane.b32.xlu0 %v1396, 126
    %v1447 = vpop.permute.xlu0 %1446
    %1448 = vrot.lane.b32.xlu0 %v1397, 126
    %v1449 = vpop.permute.xlu0 %1448
    %1450 = vrot.lane.b32.xlu0 %v1398, 126
    %v1451 = vpop.permute.xlu0 %1450
    %1452 = vrot.lane.b32.xlu0 %v1399, 126
    %v1453 = vpop.permute.xlu0 %1452
    %1454 = vrot.lane.b32.xlu0 %v1400, 126
    %v1455 = vpop.permute.xlu0 %1454
    %1456 = vrot.lane.b32.xlu0 %v1401, 126
    %v1457 = vpop.permute.xlu0 %1456
    %1458 = vrot.lane.b32.xlu0 %v1402, 126
    %v1459 = vpop.permute.xlu0 %1458
    %1460 = vrot.lane.b32.xlu0 %v1403, 126
    %v1461 = vpop.permute.xlu0 %1460
    %1462 = vrot.lane.b32.xlu0 %v1404, 126
    %v1463 = vpop.permute.xlu0 %1462
    %1464 = vrot.lane.b32.xlu0 %v1405, 126
    %v1465 = vpop.permute.xlu0 %1464
    %1466 = vrot.lane.b32.xlu0 %v1406, 126
    %v1467 = vpop.permute.xlu0 %1466
    %1468 = vrot.lane.b32.xlu0 %v1407, 126
    %v1469 = vpop.permute.xlu0 %1468
    %1470 = vrot.lane.b32.xlu0 %v1408, 126
    %v1471 = vpop.permute.xlu0 %1470
    %1472 = vrot.lane.b32.xlu0 %v1409, 126
    %v1473 = vpop.permute.xlu0 %1472
    %1474 = vrot.lane.b32.xlu0 %v1410, 126
    %v1475 = vpop.permute.xlu0 %1474
    %1476 = vrot.lane.b32.xlu0 %v1411, 126
    %v1477 = vpop.permute.xlu0 %1476
    %1478 = vrot.lane.b32.xlu0 %v1412, 126
    %v1479 = vpop.permute.xlu0 %1478
    %1480 = vrot.lane.b32.xlu0 %v1413, 126
    %v1481 = vpop.permute.xlu0 %1480
    %1482 = vrot.lane.b32.xlu0 %v1414, 126
    %v1483 = vpop.permute.xlu0 %1482
    %1484 = vrot.lane.b32.xlu0 %v1415, 126
    %v1485 = vpop.permute.xlu0 %1484
    %1486 = vrot.lane.b32.xlu0 %v1416, 126
    %v1487 = vpop.permute.xlu0 %1486
    %1488 = vrot.lane.b32.xlu0 %v1417, 126
    %v1489 = vpop.permute.xlu0 %1488
    %v1514 = vmax.f32 %v1130, %v1443
    %v1515 = vmax.f32 %v1131, %v1445
    %v1516 = vmax.f32 %v1132, %v1447
    %v1517 = vmax.f32 %v1133, %v1449
    %v1518 = vmax.f32 %v1134, %v1451
    %v1519 = vmax.f32 %v1135, %v1453
    %v1520 = vmax.f32 %v1136, %v1455
    %v1521 = vmax.f32 %v1137, %v1457
    %v1522 = vmax.f32 %v1138, %v1459
    %v1523 = vmax.f32 %v1139, %v1461
    %v1524 = vmax.f32 %v1140, %v1463
    %v1525 = vmax.f32 %v1141, %v1465
    %v1526 = vmax.f32 %v1142, %v1467
    %v1527 = vmax.f32 %v1143, %v1469
    %v1528 = vmax.f32 %v1144, %v1471
    %v1529 = vmax.f32 %v1145, %v1473
    %v1530 = vmax.f32 %v1146, %v1475
    %v1531 = vmax.f32 %v1147, %v1477
    %v1532 = vmax.f32 %v1148, %v1479
    %v1533 = vmax.f32 %v1149, %v1481
    %v1534 = vmax.f32 %v1150, %v1483
    %v1535 = vmax.f32 %v1151, %v1485
    %v1536 = vmax.f32 %v1152, %v1487
    %v1537 = vmax.f32 %v1153, %v1489
    %v1538 = vmul.f32 %v1322, 0.5
    %v1539 = vmul.f32 %v1323, 0.5
    %v1540 = vmul.f32 %v1324, 0.5
    %v1541 = vmul.f32 %v1325, 0.5
    %v1542 = vmul.f32 %v1326, 0.5
    %v1543 = vmul.f32 %v1327, 0.5
    %v1544 = vmul.f32 %v1328, 0.5
    %v1545 = vmul.f32 %v1329, 0.5
    %v1546 = vmul.f32 %v1330, 0.5
    %v1547 = vmul.f32 %v1331, 0.5
    %v1548 = vmul.f32 %v1332, 0.5
    %v1549 = vmul.f32 %v1333, 0.5
    %v1550 = vmul.f32 %v1334, 0.5
    %v1551 = vmul.f32 %v1335, 0.5
    %v1552 = vmul.f32 %v1336, 0.5
    %v1553 = vmul.f32 %v1337, 0.5
    %v1554 = vmul.f32 %v1338, 0.5
    %v1555 = vmul.f32 %v1339, 0.5
    %v1556 = vmul.f32 %v1340, 0.5
    %v1557 = vmul.f32 %v1341, 0.5
    %v1558 = vmul.f32 %v1342, 0.5
    %v1559 = vmul.f32 %v1343, 0.5
    %v1560 = vmul.f32 %v1344, 0.5
    %v1561 = vmul.f32 %v1345, 0.5
    %v1562 = vmul.f32 %v1514, 0.5
    %v1563 = vmul.f32 %v1515, 0.5
    %v1564 = vmul.f32 %v1516, 0.5
    %v1565 = vmul.f32 %v1517, 0.5
    %v1566 = vmul.f32 %v1518, 0.5
    %v1567 = vmul.f32 %v1519, 0.5
    %v1568 = vmul.f32 %v1520, 0.5
    %v1569 = vmul.f32 %v1521, 0.5
    %v1570 = vmul.f32 %v1522, 0.5
    %v1571 = vmul.f32 %v1523, 0.5
    %v1572 = vmul.f32 %v1524, 0.5
    %v1573 = vmul.f32 %v1525, 0.5
    %v1574 = vmul.f32 %v1526, 0.5
    %v1575 = vmul.f32 %v1527, 0.5
    %v1576 = vmul.f32 %v1528, 0.5
    %v1577 = vmul.f32 %v1529, 0.5
    %v1578 = vmul.f32 %v1530, 0.5
    %v1579 = vmul.f32 %v1531, 0.5
    %v1580 = vmul.f32 %v1532, 0.5
    %v1581 = vmul.f32 %v1533, 0.5
    %v1582 = vmul.f32 %v1534, 0.5
    %v1583 = vmul.f32 %v1535, 0.5
    %v1584 = vmul.f32 %v1536, 0.5
    %v1585 = vmul.f32 %v1537, 0.5
    %v1586 = vadd.f32 %v1538, %v1562
    %v1587 = vadd.f32 %v1539, %v1563
    %v1588 = vadd.f32 %v1540, %v1564
    %v1589 = vadd.f32 %v1541, %v1565
    %v1590 = vadd.f32 %v1542, %v1566
    %v1591 = vadd.f32 %v1543, %v1567
    %v1592 = vadd.f32 %v1544, %v1568
    %v1593 = vadd.f32 %v1545, %v1569
    %v1594 = vadd.f32 %v1546, %v1570
    %v1595 = vadd.f32 %v1547, %v1571
    %v1596 = vadd.f32 %v1548, %v1572
    %v1597 = vadd.f32 %v1549, %v1573
    %v1598 = vadd.f32 %v1550, %v1574
    %v1599 = vadd.f32 %v1551, %v1575
    %v1600 = vadd.f32 %v1552, %v1576
    %v1601 = vadd.f32 %v1553, %v1577
    %v1602 = vadd.f32 %v1554, %v1578
    %v1603 = vadd.f32 %v1555, %v1579
    %v1604 = vadd.f32 %v1556, %v1580
    %v1605 = vadd.f32 %v1557, %v1581
    %v1606 = vadd.f32 %v1558, %v1582
    %v1607 = vadd.f32 %v1559, %v1583
    %v1608 = vadd.f32 %v1560, %v1584
    %v1609 = vadd.f32 %v1561, %v1585
    %v1610 = vadd.f32 %v1586, %v1588
    %v1611 = vadd.f32 %v1587, %v1589
    %v1612 = vadd.f32 %v1598, %v1600
    %v1613 = vadd.f32 %v1599, %v1601
    %v1614 = vadd.f32 %v1610, %v1590
    %v1615 = vadd.f32 %v1611, %v1591
    %v1616 = vadd.f32 %v1612, %v1602
    %v1617 = vadd.f32 %v1613, %v1603
    %v1618 = vadd.f32 %v1614, %v1592
    %v1619 = vadd.f32 %v1615, %v1593
    %v1620 = vadd.f32 %v1616, %v1604
    %v1621 = vadd.f32 %v1617, %v1605
    %v1622 = vadd.f32 %v1618, %v1594
    %v1623 = vadd.f32 %v1619, %v1595
    %v1624 = vadd.f32 %v1620, %v1606
    %v1625 = vadd.f32 %v1621, %v1607
    %v1626 = vadd.f32 %v1622, %v1596
    %v1627 = vadd.f32 %v1623, %v1597
    %v1628 = vadd.f32 %v1624, %v1608
    %v1629 = vadd.f32 %v1625, %v1609
    %v1630 = vcombine.high %v1626, 0.0
    %v1632 = vunpack.c.l.s4 1983009808
    %v1633 = vunpack.c.0.s8 %v1632
    %v1634 = vlaneseq
    %v1635 = vshrl.u32 %v1634, 7
    %v1636 = vsub.s32 %v1633, %v1635
    %v1637 = vrot.slane %v1626, %v1636
    %v1639 = vunpack.c.l.s4 1983009808
    %v1640 = vunpack.c.0.s8 %v1639
    %v1641 = vlaneseq
    %v1642 = vshrl.u32 %v1641, 7
    %v1643 = vsub.s32 %v1640, %v1642
    %v1644 = vrot.slane %v1630, %v1643
    %v1645 = vcombine.high %v1628, 0.0
    %v1647 = vunpack.c.l.s4 1983009808
    %v1648 = vunpack.c.0.s8 %v1647
    %v1649 = vlaneseq
    %v1650 = vshrl.u32 %v1649, 7
    %v1651 = vsub.s32 %v1648, %v1650
    %v1652 = vrot.slane %v1628, %v1651
    %v1654 = vunpack.c.l.s4 1983009808
    %v1655 = vunpack.c.0.s8 %v1654
    %v1656 = vlaneseq
    %v1657 = vshrl.u32 %v1656, 7
    %v1658 = vsub.s32 %v1655, %v1657
    %v1659 = vrot.slane %v1645, %v1658
    %v1660 = vcombine.low %v1637, %v1652
    %v1661 = vcombine.high %v1637, %v1652
    %v1663 = vunpack.c.l.s4 1934713408
    %v1664 = vunpack.c.0.s8 %v1663
    %v1665 = vlaneseq
    %v1666 = vshrl.u32 %v1665, 7
    %v1667 = vsub.s32 %v1664, %v1666
    %v1668 = vrot.slane %v1660, %v1667
    %v1670 = vunpack.c.l.s4 1934713408
    %v1671 = vunpack.c.0.s8 %v1670
    %v1672 = vlaneseq
    %v1673 = vshrl.u32 %v1672, 7
    %v1674 = vsub.s32 %v1671, %v1673
    %v1675 = vrot.slane %v1661, %v1674
    %v1676 = vcombine.low %v1644, %v1659
    %v1677 = vcombine.high %v1644, %v1659
    %v1679 = vunpack.c.l.s4 1934713408
    %v1680 = vunpack.c.0.s8 %v1679
    %v1681 = vlaneseq
    %v1682 = vshrl.u32 %v1681, 7
    %v1683 = vsub.s32 %v1680, %v1682
    %v1684 = vrot.slane %v1676, %v1683
    %v1686 = vunpack.c.l.s4 1934713408
    %v1687 = vunpack.c.0.s8 %v1686
    %v1688 = vlaneseq
    %v1689 = vshrl.u32 %v1688, 7
    %v1690 = vsub.s32 %v1687, %v1689
    %v1691 = vrot.slane %v1677, %v1690
    %v1692 = vcombine.high %v1668, 0.0
    %v1693 = vcombine.high %v1675, 0.0
    %v1694 = vcombine.high %v1684, 0.0
    %v1695 = vcombine.high %v1691, 0.0
    %v1696 = vcombine.high %v1627, 0.0
    %v1698 = vunpack.c.l.s4 1983009808
    %v1699 = vunpack.c.0.s8 %v1698
    %v1700 = vlaneseq
    %v1701 = vshrl.u32 %v1700, 7
    %v1702 = vsub.s32 %v1699, %v1701
    %v1703 = vrot.slane %v1627, %v1702
    %v1705 = vunpack.c.l.s4 1983009808
    %v1706 = vunpack.c.0.s8 %v1705
    %v1707 = vlaneseq
    %v1708 = vshrl.u32 %v1707, 7
    %v1709 = vsub.s32 %v1706, %v1708
    %v1710 = vrot.slane %v1696, %v1709
    %v1711 = vcombine.high %v1629, 0.0
    %v1713 = vunpack.c.l.s4 1983009808
    %v1714 = vunpack.c.0.s8 %v1713
    %v1715 = vlaneseq
    %v1716 = vshrl.u32 %v1715, 7
    %v1717 = vsub.s32 %v1714, %v1716
    %v1718 = vrot.slane %v1629, %v1717
    %v1720 = vunpack.c.l.s4 1983009808
    %v1721 = vunpack.c.0.s8 %v1720
    %v1722 = vlaneseq
    %v1723 = vshrl.u32 %v1722, 7
    %v1724 = vsub.s32 %v1721, %v1723
    %v1725 = vrot.slane %v1711, %v1724
    %v1726 = vcombine.low %v1703, %v1718
    %v1727 = vcombine.high %v1703, %v1718
    %v1729 = vunpack.c.l.s4 1934713408
    %v1730 = vunpack.c.0.s8 %v1729
    %v1731 = vlaneseq
    %v1732 = vshrl.u32 %v1731, 7
    %v1733 = vsub.s32 %v1730, %v1732
    %v1734 = vrot.slane %v1726, %v1733
    %v1736 = vunpack.c.l.s4 1934713408
    %v1737 = vunpack.c.0.s8 %v1736
    %v1738 = vlaneseq
    %v1739 = vshrl.u32 %v1738, 7
    %v1740 = vsub.s32 %v1737, %v1739
    %v1741 = vrot.slane %v1727, %v1740
    %v1742 = vcombine.low %v1710, %v1725
    %v1743 = vcombine.high %v1710, %v1725
    %v1745 = vunpack.c.l.s4 1934713408
    %v1746 = vunpack.c.0.s8 %v1745
    %v1747 = vlaneseq
    %v1748 = vshrl.u32 %v1747, 7
    %v1749 = vsub.s32 %v1746, %v1748
    %v1750 = vrot.slane %v1742, %v1749
    %v1752 = vunpack.c.l.s4 1934713408
    %v1753 = vunpack.c.0.s8 %v1752
    %v1754 = vlaneseq
    %v1755 = vshrl.u32 %v1754, 7
    %v1756 = vsub.s32 %v1753, %v1755
    %v1757 = vrot.slane %v1743, %v1756
    %v1758 = vcombine.high %v1734, 0.0
    %v1759 = vcombine.high %v1741, 0.0
    %v1760 = vcombine.high %v1750, 0.0
    %v1761 = vcombine.high %v1757, 0.0
    %1763 = vrot.lane.b32.xlu0 %v1692, 14
    %v1764 = vpop.permute.xlu0 %1763
    %1767 = vrot.lane.b32.xlu0 %v1675, 28
    %v1768 = vpop.permute.xlu0 %1767
    %1771 = vrot.lane.b32.xlu0 %v1693, 42
    %v1772 = vpop.permute.xlu0 %1771
    %1775 = vrot.lane.b32.xlu0 %v1684, 56
    %v1776 = vpop.permute.xlu0 %1775
    %1779 = vrot.lane.b32.xlu0 %v1694, 70
    %v1780 = vpop.permute.xlu0 %1779
    %1783 = vrot.lane.b32.xlu0 %v1691, 84
    %v1784 = vpop.permute.xlu0 %1783
    %1787 = vrot.lane.b32.xlu0 %v1695, 98
    %v1788 = vpop.permute.xlu0 %1787
    %1791 = vrot.lane.b32.xlu0 %v1734, 112
    %v1792 = vpop.permute.xlu0 %1791
    %1795 = vrot.lane.b32.xlu0 %v1758, 126
    %v1796 = vpop.permute.xlu0 %1795
    %1799 = vrot.lane.b32.xlu0 %v1741, 12
    %v1800 = vpop.permute.xlu0 %1799
    %1803 = vrot.lane.b32.xlu0 %v1759, 26
    %v1804 = vpop.permute.xlu0 %1803
    %1807 = vrot.lane.b32.xlu0 %v1750, 40
    %v1808 = vpop.permute.xlu0 %1807
    %1811 = vrot.lane.b32.xlu0 %v1760, 54
    %v1812 = vpop.permute.xlu0 %1811
    %1815 = vrot.lane.b32.xlu0 %v1757, 68
    %v1816 = vpop.permute.xlu0 %1815
    %1819 = vrot.lane.b32.xlu0 %v1761, 82
    %v1820 = vpop.permute.xlu0 %1819
    %vm1822 = vcmask 113664
    %v1823 = vsel %vm1822, %v1668, %v1764
    %vm1824 = vcmask 228352
    %v1825 = vsel %vm1824, %v1823, %v1768
    %vm1826 = vcmask 343040
    %v1827 = vsel %vm1826, %v1825, %v1772
    %vm1828 = vcmask 457728
    %v1829 = vsel %vm1828, %v1827, %v1776
    %vm1830 = vcmask 572416
    %v1831 = vsel %vm1830, %v1829, %v1780
    %vm1832 = vcmask 687104
    %v1833 = vsel %vm1832, %v1831, %v1784
    %vm1834 = vcmask 801792
    %v1835 = vsel %vm1834, %v1833, %v1788
    %vm1836 = vcmask 916480
    %v1837 = vsel %vm1836, %v1835, %v1792
    %vm1838 = vcmask 1031168
    %v1839 = vsel %vm1838, %v1837, %v1796
    %vm1840 = vcmask 97280
    %v1841 = vsel %vm1840, %v1796, %v1800
    %vm1842 = vcmask 211968
    %v1843 = vsel %vm1842, %v1841, %v1804
    %vm1844 = vcmask 326656
    %v1845 = vsel %vm1844, %v1843, %v1808
    %vm1846 = vcmask 441344
    %v1847 = vsel %vm1846, %v1845, %v1812
    %vm1848 = vcmask 556032
    %v1849 = vsel %vm1848, %v1847, %v1816
    %vm1850 = vcmask 670720
    %v1851 = vsel %vm1850, %v1849, %v1820
    %v1852 = vld [vmem:[#allocation5 + $0x20] sm:$0xff]
    %v1853 = vld [vmem:[#allocation5 + $0x28] sm:$0xff]
    %v1854 = vld [vmem:[#allocation5 + $0x30] sm:$0xff]
    %v1855 = vld [vmem:[#allocation5 + $0x38] sm:$0xff]
    %v1856 = vld [vmem:[#allocation5 + $0x40] sm:$0xff]
    %v1857 = vld [vmem:[#allocation5 + $0x48] sm:$0xff]
    %v1858 = vld [vmem:[#allocation5 + $0x50] sm:$0xff]
    %v1859 = vld [vmem:[#allocation5 + $0x58] sm:$0xff]
    %v1860 = vld [vmem:[#allocation5 + $0x60] sm:$0xff]
    %v1861 = vld [vmem:[#allocation5 + $0x68] sm:$0xff]
    %v1862 = vld [vmem:[#allocation5 + $0x70] sm:$0xff]
    %v1863 = vld [vmem:[#allocation5 + $0x78] sm:$0xff]
    %v1864 = vld [vmem:[#allocation5 + $0x80] sm:$0xff]
    %v1865 = vld [vmem:[#allocation5 + $0x88] sm:$0xff]
    %v1866 = vld [vmem:[#allocation5 + $0x90] sm:$0xff]
    %v1867 = vld [vmem:[#allocation5 + $0x98] sm:$0xff]
    %v1868 = vld [vmem:[#allocation5 + $0xa0] sm:$0xff]
    %v1869 = vld [vmem:[#allocation5 + $0xa8] sm:$0xff]
    %v1870 = vld [vmem:[#allocation5 + $0xb0] sm:$0xff]
    %v1871 = vld [vmem:[#allocation5 + $0xb8] sm:$0xff]
    %v1872 = vld [vmem:[#allocation5 + $0xc0] sm:$0xff]
    %v1873 = vld [vmem:[#allocation5 + $0xc8] sm:$0xff]
    %v1874 = vld [vmem:[#allocation5 + $0xd0] sm:$0xff]
    %v1875 = vld [vmem:[#allocation5 + $0xd8] sm:$0xff]
    %v1876 = vld [vmem:[#allocation5 + $0xe0] sm:$0xff]
    %v1877 = vld [vmem:[#allocation5 + $0xe8] sm:$0xff]
    %v1878 = vld [vmem:[#allocation5 + $0xf0] sm:$0xff]
    %v1879 = vld [vmem:[#allocation5 + $0xf8] sm:$0xff]
    %v1880 = vld [vmem:[#allocation5 + $0x1d0] sm:$0x1]
    %v1881 = vlaneseq
    %v1882 = vshrl.u32 %v1881, 7
    %v1883 = vsub.s32 0, %v1882
    %v1884 = vrot.slane %v1880, %v1883
    %vm1885 = vcmask 785408
    %v1887 = vsel %vm1885, %v1851, 0
    %1889 = vmatprep.subr.mxu0 0.0
    %1890 = vmatpush1.msra.mxu0 %v1867
    %1891 = vmatprep.subr.mxu0 0.0
    %1892 = vmatpush1.msra.mxu0 %v1866
    %1893 = vmatprep.subr.mxu0 0.0
    %1894 = vmatpush1.msra.mxu0 %v1865
    %1895 = vmatprep.subr.mxu0 0.0
    %1896 = vmatpush1.msra.mxu0 %v1864
    %1897 = vmatprep.subr.mxu0 0.0
    %1898 = vmatpush1.msra.mxu0 %v1863
    %1899 = vmatprep.subr.mxu0 0.0
    %1900 = vmatpush1.msra.mxu0 %v1862
    %1901 = vmatprep.subr.mxu0 0.0
    %1902 = vmatpush1.msra.mxu0 %v1861
    %1903 = vmatprep.subr.mxu0 0.0
    %1904 = vmatpush1.msra.mxu0 %v1860
    %1905 = vmatprep.subr.mxu0 0.0
    %1906 = vmatpush1.msra.mxu0 %v1859
    %1907 = vmatprep.subr.mxu0 0.0
    %1908 = vmatpush1.msra.mxu0 %v1858
    %1909 = vmatprep.subr.mxu0 0.0
    %1910 = vmatpush1.msra.mxu0 %v1857
    %1911 = vmatprep.subr.mxu0 0.0
    %1912 = vmatpush1.msra.mxu0 %v1856
    %1913 = vmatprep.subr.mxu0 0.0
    %1914 = vmatpush1.msra.mxu0 %v1855
    %1915 = vmatprep.subr.mxu0 0.0
    %1916 = vmatpush1.msra.mxu0 %v1854
    %1917 = vmatprep.subr.mxu0 0.0
    %1918 = vmatpush1.msra.mxu0 %v1853
    %1919 = vmatprep.subr.mxu0 0.0
    %1920 = vmatpush1.msra.mxu0 %v1852
    %1921 = vmatprep.subr.mxu0 0.0
    %1922 = vmatpush2.msra.mxu0 0.0
    %1923 = vmatprep.subr.mxu0 0.0
    %1924 = vmatpush2.msra.mxu0 0.0
    %1925 = vmatprep.subr.mxu0 0.0
    %1926 = vmatpush2.msra.mxu0 0.0
    %1927 = vmatprep.subr.mxu0 0.0
    %1928 = vmatpush2.msra.mxu0 0.0
    %1929 = vmatprep.subr.mxu0 0.0
    %1930 = vmatpush2.msra.mxu0 %v1879
    %1931 = vmatprep.subr.mxu0 0.0
    %1932 = vmatpush2.msra.mxu0 %v1878
    %1933 = vmatprep.subr.mxu0 0.0
    %1934 = vmatpush2.msra.mxu0 %v1877
    %1935 = vmatprep.subr.mxu0 0.0
    %1936 = vmatpush2.msra.mxu0 %v1876
    %1937 = vmatprep.subr.mxu0 0.0
    %1938 = vmatpush2.msra.mxu0 %v1875
    %1939 = vmatprep.subr.mxu0 0.0
    %1940 = vmatpush2.msra.mxu0 %v1874
    %1941 = vmatprep.subr.mxu0 0.0
    %1942 = vmatpush2.msra.mxu0 %v1873
    %1943 = vmatprep.subr.mxu0 0.0
    %1944 = vmatpush2.msra.mxu0 %v1872
    %1945 = vmatprep.subr.mxu0 0.0
    %1946 = vmatpush2.msra.mxu0 %v1871
    %1947 = vmatprep.subr.mxu0 0.0
    %1948 = vmatpush2.msra.mxu0 %v1870
    %1949 = vmatprep.subr.mxu0 0.0
    %1950 = vmatpush2.msra.mxu0 %v1869
    %1951 = vmatprep.subr.mxu0 0.0
    %1952 = vmatpush2.msra.mxu0 %v1868
    %1953 = vmatprep.mubr.f32.mxu0 %v1887
    %1954 = vmatmul.mubr.f32.gmra.mxu0 %v1839
    %v1955 = vpop.f32.mrf.mxu0
    %v1956 = vadd.f32 %v1884, %v1955
    %v1957 = vpop.f32.mrf.mxu0
    %1958 = vdwg.mxu0
    %v1959 = vmax.f32 %v1956, 0.0
    %v1960 = vld [vmem:[#allocation5 + $0x100] sm:$0xff]
    %v1961 = vld [vmem:[#allocation5 + $0x108] sm:$0xff]
    %v1962 = vld [vmem:[#allocation5 + $0x110] sm:$0xff]
    %v1963 = vld [vmem:[#allocation5 + $0x118] sm:$0xff]
    %v1964 = vld [vmem:[#allocation5 + $0x120] sm:$0xff]
    %v1965 = vld [vmem:[#allocation5 + $0x128] sm:$0xff]
    %v1966 = vld [vmem:[#allocation5 + $0x130] sm:$0xff]
    %v1967 = vld [vmem:[#allocation5 + $0x138] sm:$0xff]
    %v1968 = vld [vmem:[#allocation5 + $0x140] sm:$0xff]
    %v1969 = vld [vmem:[#allocation5 + $0x148] sm:$0xff]
    %v1970 = vld [vmem:[#allocation5 + $0x150] sm:$0xff]
    %v1971 = vld [vmem:[#allocation5 + $0x158] sm:$0xff]
    %v1972 = vld [vmem:[#allocation5 + $0x160] sm:$0xff]
    %v1973 = vld [vmem:[#allocation5 + $0x168] sm:$0xff]
    %v1974 = vld [vmem:[#allocation5 + $0x170] sm:$0xff]
    %v1975 = vld [vmem:[#allocation5 + $0x1d8] sm:$0x1]
    %v1976 = vlaneseq
    %v1977 = vshrl.u32 %v1976, 7
    %v1978 = vsub.s32 0, %v1977
    %v1979 = vrot.slane %v1975, %v1978
    %vm1980 = vcmask 982016
    %v1982 = vsel %vm1980, %v1959, 0
    %1984 = vmatprep.subr.mxu0 0.0
    %1985 = vmatpush1.msra.mxu0 0.0
    %1986 = vmatprep.subr.mxu0 0.0
    %1987 = vmatpush1.msra.mxu0 %v1974
    %1988 = vmatprep.subr.mxu0 0.0
    %1989 = vmatpush1.msra.mxu0 %v1973
    %1990 = vmatprep.subr.mxu0 0.0
    %1991 = vmatpush1.msra.mxu0 %v1972
    %1992 = vmatprep.subr.mxu0 0.0
    %1993 = vmatpush1.msra.mxu0 %v1971
    %1994 = vmatprep.subr.mxu0 0.0
    %1995 = vmatpush1.msra.mxu0 %v1970
    %1996 = vmatprep.subr.mxu0 0.0
    %1997 = vmatpush1.msra.mxu0 %v1969
    %1998 = vmatprep.subr.mxu0 0.0
    %1999 = vmatpush1.msra.mxu0 %v1968
    %2000 = vmatprep.subr.mxu0 0.0
    %2001 = vmatpush1.msra.mxu0 %v1967
    %2002 = vmatprep.subr.mxu0 0.0
    %2003 = vmatpush1.msra.mxu0 %v1966
    %2004 = vmatprep.subr.mxu0 0.0
    %2005 = vmatpush1.msra.mxu0 %v1965
    %2006 = vmatprep.subr.mxu0 0.0
    %2007 = vmatpush1.msra.mxu0 %v1964
    %2008 = vmatprep.subr.mxu0 0.0
    %2009 = vmatpush1.msra.mxu0 %v1963
    %2010 = vmatprep.subr.mxu0 0.0
    %2011 = vmatpush1.msra.mxu0 %v1962
    %2012 = vmatprep.subr.mxu0 0.0
    %2013 = vmatpush1.msra.mxu0 %v1961
    %2014 = vmatprep.subr.mxu0 0.0
    %2015 = vmatpush1.msra.mxu0 %v1960
    %2016 = vmatprep.subr.mxu0 0.0
    %2017 = vmatpush2.msra.mxu0 0.0
    %2018 = vmatprep.subr.mxu0 0.0
    %2019 = vmatpush2.msra.mxu0 0.0
    %2020 = vmatprep.subr.mxu0 0.0
    %2021 = vmatpush2.msra.mxu0 0.0
    %2022 = vmatprep.subr.mxu0 0.0
    %2023 = vmatpush2.msra.mxu0 0.0
    %2024 = vmatprep.subr.mxu0 0.0
    %2025 = vmatpush2.msra.mxu0 0.0
    %2026 = vmatprep.subr.mxu0 0.0
    %2027 = vmatpush2.msra.mxu0 0.0
    %2028 = vmatprep.subr.mxu0 0.0
    %2029 = vmatpush2.msra.mxu0 0.0
    %2030 = vmatprep.subr.mxu0 0.0
    %2031 = vmatpush2.msra.mxu0 0.0
    %2032 = vmatprep.subr.mxu0 0.0
    %2033 = vmatpush2.msra.mxu0 0.0
    %2034 = vmatprep.subr.mxu0 0.0
    %2035 = vmatpush2.msra.mxu0 0.0
    %2036 = vmatprep.subr.mxu0 0.0
    %2037 = vmatpush2.msra.mxu0 0.0
    %2038 = vmatprep.subr.mxu0 0.0
    %2039 = vmatpush2.msra.mxu0 0.0
    %2040 = vmatprep.subr.mxu0 0.0
    %2041 = vmatpush2.msra.mxu0 0.0
    %2042 = vmatprep.subr.mxu0 0.0
    %2043 = vmatpush2.msra.mxu0 0.0
    %2044 = vmatprep.subr.mxu0 0.0
    %2045 = vmatpush2.msra.mxu0 0.0
    %2046 = vmatprep.subr.mxu0 0.0
    %2047 = vmatpush2.msra.mxu0 0.0
    %2048 = vmatprep.mubr.f32.mxu0 0.0
    %2049 = vmatmul.mubr.f32.gmra.mxu0 %v1982
    %v2050 = vpop.f32.mrf.mxu0
    %v2051 = vadd.f32 %v1979, %v2050
    %v2052 = vpop.f32.mrf.mxu0
    %2053 = vdwg.mxu0
    %v2054 = vmax.f32 %v2051, 0.0
    %v2055 = vld [vmem:[#allocation5 + $0x178] sm:$0xff]
    %v2056 = vld [vmem:[#allocation5 + $0x180] sm:$0xff]
    %v2057 = vld [vmem:[#allocation5 + $0x188] sm:$0xff]
    %v2058 = vld [vmem:[#allocation5 + $0x190] sm:$0xff]
    %v2059 = vld [vmem:[#allocation5 + $0x198] sm:$0xff]
    %v2060 = vld [vmem:[#allocation5 + $0x1a0] sm:$0xff]
    %v2061 = vld [vmem:[#allocation5 + $0x1a8] sm:$0xff]
    %v2062 = vld [vmem:[#allocation5 + $0x1b0] sm:$0xff]
    %v2063 = vld [vmem:[#allocation5 + $0x1b8] sm:$0xff]
    %v2064 = vld [vmem:[#allocation5 + $0x1c0] sm:$0xff]
    %v2065 = vld [vmem:[#allocation5 + $0x1c8] sm:$0xf]
    %v2066 = vld [vmem:[#allocation5 + $0x1e0] sm:$0x1]
    %v2067 = vlaneseq
    %v2068 = vshrl.u32 %v2067, 7
    %v2069 = vsub.s32 0, %v2068
    %v2070 = vrot.slane %v2066, %v2069
    %v2072 = vsel %vm1832, %v2054, 0
    %vm2074 = vcmask 1043456
    %v2076 = vsel %vm2074, %v2065, 0
    %2078 = vmatprep.subr.mxu0 0.0
    %2079 = vmatpush1.msra.mxu0 0.0
    %2080 = vmatprep.subr.mxu0 0.0
    %2081 = vmatpush1.msra.mxu0 0.0
    %2082 = vmatprep.subr.mxu0 0.0
    %2083 = vmatpush1.msra.mxu0 0.0
    %2084 = vmatprep.subr.mxu0 0.0
    %2085 = vmatpush1.msra.mxu0 0.0
    %2086 = vmatprep.subr.mxu0 0.0
    %2087 = vmatpush1.msra.mxu0 0.0
    %2088 = vmatprep.subr.mxu0 0.0
    %2089 = vmatpush1.msra.mxu0 %v2076
    %2090 = vmatprep.subr.mxu0 0.0
    %2091 = vmatpush1.msra.mxu0 %v2064
    %2092 = vmatprep.subr.mxu0 0.0
    %2093 = vmatpush1.msra.mxu0 %v2063
    %2094 = vmatprep.subr.mxu0 0.0
    %2095 = vmatpush1.msra.mxu0 %v2062
    %2096 = vmatprep.subr.mxu0 0.0
    %2097 = vmatpush1.msra.mxu0 %v2061
    %2098 = vmatprep.subr.mxu0 0.0
    %2099 = vmatpush1.msra.mxu0 %v2060
    %2100 = vmatprep.subr.mxu0 0.0
    %2101 = vmatpush1.msra.mxu0 %v2059
    %2102 = vmatprep.subr.mxu0 0.0
    %2103 = vmatpush1.msra.mxu0 %v2058
    %2104 = vmatprep.subr.mxu0 0.0
    %2105 = vmatpush1.msra.mxu0 %v2057
    %2106 = vmatprep.subr.mxu0 0.0
    %2107 = vmatpush1.msra.mxu0 %v2056
    %2108 = vmatprep.subr.mxu0 0.0
    %2109 = vmatpush1.msra.mxu0 %v2055
    %2110 = vmatprep.subr.mxu0 0.0
    %2111 = vmatpush2.msra.mxu0 0.0
    %2112 = vmatprep.subr.mxu0 0.0
    %2113 = vmatpush2.msra.mxu0 0.0
    %2114 = vmatprep.subr.mxu0 0.0
    %2115 = vmatpush2.msra.mxu0 0.0
    %2116 = vmatprep.subr.mxu0 0.0
    %2117 = vmatpush2.msra.mxu0 0.0
    %2118 = vmatprep.subr.mxu0 0.0
    %2119 = vmatpush2.msra.mxu0 0.0
    %2120 = vmatprep.subr.mxu0 0.0
    %2121 = vmatpush2.msra.mxu0 0.0
    %2122 = vmatprep.subr.mxu0 0.0
    %2123 = vmatpush2.msra.mxu0 0.0
    %2124 = vmatprep.subr.mxu0 0.0
    %2125 = vmatpush2.msra.mxu0 0.0
    %2126 = vmatprep.subr.mxu0 0.0
    %2127 = vmatpush2.msra.mxu0 0.0
    %2128 = vmatprep.subr.mxu0 0.0
    %2129 = vmatpush2.msra.mxu0 0.0
    %2130 = vmatprep.subr.mxu0 0.0
    %2131 = vmatpush2.msra.mxu0 0.0
    %2132 = vmatprep.subr.mxu0 0.0
    %2133 = vmatpush2.msra.mxu0 0.0
    %2134 = vmatprep.subr.mxu0 0.0
    %2135 = vmatpush2.msra.mxu0 0.0
    %2136 = vmatprep.subr.mxu0 0.0
    %2137 = vmatpush2.msra.mxu0 0.0
    %2138 = vmatprep.subr.mxu0 0.0
    %2139 = vmatpush2.msra.mxu0 0.0
    %2140 = vmatprep.subr.mxu0 0.0
    %2141 = vmatpush2.msra.mxu0 0.0
    %2142 = vmatprep.mubr.f32.mxu0 0.0
    %2143 = vmatmul.mubr.f32.gmra.mxu0 %v2072
    %v2144 = vpop.f32.mrf.mxu0
    %v2145 = vadd.f32 %v2070, %v2144
    %v2146 = vpop.f32.mrf.mxu0
    %2147 = vdwg.mxu0
    %vm2148 = vcmask 74752
    %2149 = vst.msk [vmem:[#allocation7] sm:$0x3] %vm2148, %v2145
    // Predicated region
    $region26: #{_forward.1} parent=1 // pred_check
      _
    $region27: #{_forward.1} parent=1 // pred_check_branch
      %2151 = sbr.rel (0) target = $region29
    $region28: #{_forward.1} parent=1 // pred_region
      %s2153 = ssub.s32 32, 32
      %2154 = vsyncadd [#allocation4], %s2153
      %s2156 = sshll.u32 [#allocation7], 4
      %s2157 = int_to_ptr.vmem [resolvable:$true] %s2156
      %2159 = dma.vmem_to_hbm [thread:$0]  %s2157, 32, %s4, [#allocation4]
    $region29: #{_forward.1} parent=1 // pred_fallthru
      _
    // Predicated region
    $region30: #{_forward.1} parent=1 // pred_check
      _
    $region31: #{_forward.1} parent=1 // pred_check_branch
      %2161 = sbr.rel (0) target = $region33
    $region32: #{_forward.1} parent=1 // pred_region
      %2162 = dma.done [#allocation4], 32
    $region33: #{_forward.1} parent=1 // pred_fallthru
      _
    %2163 = vsyncpa [#allocation3], 1
    %2164 = vsyncpa [#allocation6], 1
    %2165 = vsyncpa [#allocation4], 1

</llo_original>
